<compile_context>
chip_gen: v7x
topology: tpu7x:2x2x1
jax: 0.10.0
libtpu: 0.0.40
codegen_flags: <defaults>
</compile_context>

<pallas_src>
import math
import numpy as np
import jax
import jax.numpy as jnp
from jax import lax
from jax.experimental import pallas as pl
from jax.experimental.pallas import tpu as pltpu


# ----------------------------- Pallas kernel -------------------------------

def _leaky(x):
    return jnp.where(x > 0, x, 0.01 * x)


def cell_encoder_kernel(tok_ref, bias_ref, fea_ref, w0_ref, w1_ref, wa_ref,
                        c_ref, out_ref, m_ref, den_ref, num_ref):
    # tok_ref : (TB, TL, D) bf16   token outputs for TB cells x TL keys
    # bias_ref: (1, TB, TL) f32    additive mask bias (0 = real, -65000 = pad)
    # fea_ref : (TB, F)  f32       cell features
    # w0_ref  : (F, D) f32 ; w1_ref : (D, D) f32 ; wa_ref : (D, D) bf16
    # c_ref   : (8, D) f32 packed [fc0.b, fc1.b, ln.gamma, ln.beta, att.v, 0,0,0]
    # out_ref : (TB, D) f32
    # m_ref/den_ref : (TB, 1) f32, num_ref : (TB, D) f32  online-softmax state
    kt = pl.program_id(1)

    c = c_ref[...]
    va = c[4:5, :]                                        # Attention.v row (1, D)

    @pl.when(kt == 0)
    def _init():
        # fc0 -> LeakyReLU -> fc1 -> LeakyReLU -> LayerNorm, once per cell block.
        b0, b1 = c[0:1, :], c[1:2, :]
        gamma, beta = c[2:3, :], c[3:4, :]
        cf = fea_ref[...]
        h = _leaky(jnp.dot(cf, w0_ref[...], preferred_element_type=jnp.float32) + b0)
        h = _leaky(jnp.dot(h, w1_ref[...], preferred_element_type=jnp.float32) + b1)
        mu = jnp.mean(h, axis=-1, keepdims=True)
        var = jnp.mean((h - mu) * (h - mu), axis=-1, keepdims=True)
        ln = (h - mu) * lax.rsqrt(var + 1e-5) * gamma + beta            # (TB, D)
        # Cell-feature key (never masked): seed the online-softmax state with it.
        t = jnp.tanh(jnp.dot(ln.astype(jnp.bfloat16), wa_ref[...],
                             preferred_element_type=jnp.float32))
        s_cf = jnp.sum(t * va, axis=-1, keepdims=True)                  # (TB, 1)
        m_ref[...] = s_cf
        den_ref[...] = jnp.ones_like(s_cf)                              # exp(0) = 1
        num_ref[...] = ln                                               # 1 * ln

    # ---- key tile: batched bf16 score matmul + online softmax update ----
    TB, TL, D = tok_ref.shape
    tok = tok_ref[...]                                    # single VMEM read (bf16)
    t = jnp.tanh(jnp.dot(tok.reshape(TB * TL, D), wa_ref[...],
                         preferred_element_type=jnp.float32))           # (TB*TL, D)
    s = jnp.sum(t.reshape(TB, TL, D) * va, axis=-1)                     # (TB, TL)
    s = s + bias_ref[0]                                   # masked_fill(-65000)

    m_prev = m_ref[...]
    m_new = jnp.maximum(m_prev, jnp.max(s, axis=-1, keepdims=True))     # (TB, 1)
    alpha = jnp.exp(m_prev - m_new)
    p = jnp.exp(s - m_new)                                              # (TB, TL)
    m_ref[...] = m_new
    den_ref[...] = alpha * den_ref[...] + jnp.sum(p, axis=-1, keepdims=True)
    num_ref[...] = alpha * num_ref[...] + jnp.sum(
        p[:, :, None] * tok.astype(jnp.float32), axis=1)                # (TB, D)

    @pl.when(kt == pl.num_programs(1) - 1)
    def _finalize():
        out_ref[...] = num_ref[...] * pl.reciprocal(den_ref[...], approx=True)


# --------------------------------- wrapper ----------------------------------

def _round_up(x, m):
    return (x + m - 1) // m * m


def cell_encoder_pallas(tokens, cell_masks, cell_fea, params,
                        block_cells=128, block_keys=128):
    """tokens: (bs, n_cells, L, D) transformer outputs (bf16 preferred);
    cell_masks: (bs, n_cells, L) int (1 = real token); cell_fea: (bs, n_cells, F).
    Returns (bs, n_cells, D) float32."""
    bs, n_cells, L, D = tokens.shape
    F = cell_fea.shape[-1]
    N = bs * n_cells

    # Cells per grid step: multiple of 8 (all TB-sublane operands are 32-bit).
    TB = _round_up(min(block_cells, _round_up(N, 8)), 8)
    Np = _round_up(N, TB)
    # Keys per grid step: multiple of 16 (bf16 sublane packing of the token tile).
    TL = _round_up(min(block_keys, _round_up(L, 16)), 16)
    Lp = _round_up(L, TL)
    Kt = Lp // TL

    # Tokens stay cells-major (no wrapper transpose); pad cells/keys with zeros
    # (padded keys/cells are masked via the additive bias below).
    tok = tokens.reshape(N, L, D).astype(jnp.bfloat16)
    tok = jnp.pad(tok, ((0, Np - N), (0, Lp - L), (0, 0)))

    # Additive mask bias: 0 for real tokens, -65000 for padding; padded rows /
    # padded keys get -65000 so only the (never-masked) cell-feature key survives.
    bias = jnp.where(cell_masks.reshape(N, L) == 0,
                     jnp.float32(-65000.0), jnp.float32(0.0))
    bias = jnp.pad(bias, ((0, Np - N), (0, Lp - L)), constant_values=-65000.0)
    bias = bias.reshape(Np, Kt, TL).transpose(1, 0, 2)          # (Kt, Np, TL)

    fea = cell_fea.reshape(N, F).astype(jnp.float32)
    fea = jnp.pad(fea, ((0, Np - N), (0, 0)))

    w0, w1 = params["w0"], params["w1"]
    wa_bf = params["wa"].astype(jnp.bfloat16)                   # bf16 MXU path
    # Pack the five tiny per-feature constants into one (8, D) operand.
    consts = jnp.zeros((8, D), jnp.float32)
    consts = consts.at[0].set(params["b0"]).at[1].set(params["b1"])
    consts = consts.at[2].set(params["gamma"]).at[3].set(params["beta"])
    consts = consts.at[4].set(params["va"])

    # Explicit scoped-VMEM budget: double-buffered blocks + scratch + headroom,
    # capped at 64 MiB so the same request is legal on v7x.
    blk_bytes = (TB * TL * D * 2 + TB * TL * 4 + TB * F * 4
                 + F * D * 4 + D * D * 4 + D * D * 2 + 8 * D * 4 + TB * D * 4)
    scratch_bytes = 2 * TB * 4 + TB * D * 4
    vmem_limit = int(min(max(2 * blk_bytes + scratch_bytes + (4 << 20), 32 << 20),
                         64 << 20))

    out = pl.pallas_call(
        cell_encoder_kernel,
        out_shape=jax.ShapeDtypeStruct((Np, D), jnp.float32),
        grid_spec=pltpu.PrefetchScalarGridSpec(
            num_scalar_prefetch=0,
            grid=(Np // TB, Kt),                                 # (cells, key tiles)
            in_specs=[
                pl.BlockSpec((TB, TL, D), lambda i, k: (i, k, 0)),   # tokens bf16
                pl.BlockSpec((1, TB, TL), lambda i, k: (k, i, 0)),   # mask bias f32
                pl.BlockSpec((TB, F), lambda i, k: (i, 0)),          # cell features
                pl.BlockSpec((F, D), lambda i, k: (0, 0)),           # fc0 weight
                pl.BlockSpec((D, D), lambda i, k: (0, 0)),           # fc1 weight
                pl.BlockSpec((D, D), lambda i, k: (0, 0)),           # attention W (bf16)
                pl.BlockSpec((8, D), lambda i, k: (0, 0)),           # packed constants
            ],
            out_specs=pl.BlockSpec((TB, D), lambda i, k: (i, 0)),
            scratch_shapes=[pltpu.VMEM((TB, 1), jnp.float32),        # running max
                            pltpu.VMEM((TB, 1), jnp.float32),        # denominator
                            pltpu.VMEM((TB, D), jnp.float32)],       # numerator
        ),
        compiler_params=pltpu.CompilerParams(
            dimension_semantics=("parallel", "arbitrary"),
            vmem_limit_bytes=vmem_limit),
    )(tok, bias, fea, w0, w1, wa_bf, consts)

    return out[:N].reshape(bs, n_cells, D)


# ------------------------- parameter construction --------------------------

def xavier_uniform(key, fan_in, fan_out):
    bound = math.sqrt(6.0 / (fan_in + fan_out))
    # already transposed to (in, out) so the kernel does x @ W
    return jax.random.uniform(key, (fan_in, fan_out), jnp.float32, -bound, bound)


def make_params(key, n_fea, emb_dim):
    k0, k1, k2, k3 = jax.random.split(key, 4)
    return {
        "w0": xavier_uniform(k0, n_fea, emb_dim),
        "b0": jnp.full((emb_dim,), 0.01, jnp.float32),
        "w1": xavier_uniform(k1, emb_dim, emb_dim),
        "b1": jnp.full((emb_dim,), 0.01, jnp.float32),
        "gamma": jnp.ones((emb_dim,), jnp.float32),
        "beta": jnp.zeros((emb_dim,), jnp.float32),
        "wa": xavier_uniform(k2, emb_dim, emb_dim),   # Attention.W (no bias)
        "va": xavier_uniform(k3, emb_dim, 1)[:, 0],   # Attention.v (no bias)
    }


# ----------------------------- pure-JAX reference ---------------------------

def reference(tokens, cell_masks, cell_fea, params):
    leaky = lambda x: jnp.where(x > 0, x, 0.01 * x)
    h = leaky(cell_fea @ params["w0"] + params["b0"])
    h = leaky(h @ params["w1"] + params["b1"])
    mu = h.mean(-1, keepdims=True)
    var = ((h - mu) ** 2).mean(-1, keepdims=True)
    ln = (h - mu) / jnp.sqrt(var + 1e-5) * params["gamma"] + params["beta"]
    x = jnp.concatenate([tokens, ln[:, :, None, :]], axis=2)
    bs, n_cells = tokens.shape[:2]
    masks = jnp.concatenate(
        [(1 - cell_masks)[..., None],
         jnp.zeros((bs, n_cells, 1, 1), cell_masks.dtype)], axis=2) != 0
    w = jnp.tanh(x @ params["wa"]) @ params["va"][:, None]
    w = jnp.where(masks, -65000.0, w)
    w = jax.nn.softmax(w, axis=2)
    return jnp.sum(w * x, axis=2)


# ---------------------------------- main ------------------------------------

if __name__ == "__main__":
    bs, n_cells, max_len = 2, 6, 24
    emb_dim, n_fea, vocab = 32, 16, 50

    root = jax.random.PRNGKey(0)
    k_ids, k_mask, k_fea, k_emb, k_par = jax.random.split(root, 5)

    ids = jax.random.randint(k_ids, (bs, n_cells, max_len), 0, vocab)
    # attention-style mask: 1 = real token, 0 = padding
    cell_masks = (jax.random.uniform(k_mask, (bs, n_cells, max_len)) > 0.3).astype(jnp.int32)
    cell_masks = cell_masks.at[..., 0].set(1)  # at least one real token per cell
    cell_fea = jax.random.normal(k_fea, (bs, n_cells, n_fea), jnp.float32)

    # Deterministic stand-in for the pretrained transformer output, emitted in
    # bf16 so the kernel streams half the token bytes (glue; see TODO above).
    emb_table = (jax.random.normal(k_emb, (vocab, emb_dim), jnp.float32) * 0.1
                 ).astype(jnp.bfloat16)
    tokens = emb_table[ids] * cell_masks[..., None].astype(jnp.bfloat16)

    params = make_params(k_par, n_fea, emb_dim)

    # block_cells=8 -> N=12 cells pad to 16 (2 cell steps); block_keys=16 ->
    # L=24 pads to 32 (2 key tiles), exercising the online-softmax key tiling
    # and both padding paths.  Leave defaults (128/128) for realistic shapes.
    out = cell_encoder_pallas(tokens, cell_masks, cell_fea, params,
                              block_cells=8, block_keys=16)
    out = jax.block_until_ready(out)

    ref = reference(tokens.astype(jnp.float32), cell_masks, cell_fea, params)
    # bf16 score matmul + approx reciprocal vs. f32 reference -> ~1% level diffs.
    np.testing.assert_allclose(np.asarray(out), np.asarray(ref), rtol=5e-2, atol=5e-2)

    print("KERNEL_OK")
</pallas_src>

<mosaic_0001>
module attributes {stable_mosaic.version = 11 : i64} {
  func.func @cell_encoder_kernel(%arg0: i32, %arg1: i32, %arg2: memref<8x16x32xbf16, #tpu.memory_space<vmem>>, %arg3: memref<1x8x16xf32, #tpu.memory_space<vmem>>, %arg4: memref<8x16xf32, #tpu.memory_space<vmem>>, %arg5: memref<16x32xf32, #tpu.memory_space<vmem>>, %arg6: memref<32x32xf32, #tpu.memory_space<vmem>>, %arg7: memref<32x32xbf16, #tpu.memory_space<vmem>>, %arg8: memref<8x32xf32, #tpu.memory_space<vmem>>, %arg9: memref<8x32xf32, #tpu.memory_space<vmem>>, %arg10: memref<8x1xf32, #tpu.memory_space<vmem>>, %arg11: memref<8x1xf32, #tpu.memory_space<vmem>>, %arg12: memref<8x32xf32, #tpu.memory_space<vmem>>) attributes {dimension_semantics = [#tpu.dimension_semantics<parallel>, #tpu.dimension_semantics<arbitrary>], iteration_bounds = array<i64: 2, 2>, scalar_prefetch = 0 : i64, scratch_operands = 3 : i64, tpu.core_type = #tpu.core_type<tc>, window_params = [{transform_indices = @transform_0, window_bounds = array<i64: 8, 16, 32>}, {transform_indices = @transform_1, window_bounds = array<i64: 1, 8, 16>}, {transform_indices = @transform_2, window_bounds = array<i64: 8, 16>}, {pipeline_mode = #tpu.pipeline_mode<synchronous>, transform_indices = @transform_3, window_bounds = array<i64: 16, 32>}, {pipeline_mode = #tpu.pipeline_mode<synchronous>, transform_indices = @transform_4, window_bounds = array<i64: 32, 32>}, {pipeline_mode = #tpu.pipeline_mode<synchronous>, transform_indices = @transform_5, window_bounds = array<i64: 32, 32>}, {pipeline_mode = #tpu.pipeline_mode<synchronous>, transform_indices = @transform_6, window_bounds = array<i64: 8, 32>}, {transform_indices = @transform_7, window_bounds = array<i64: 8, 32>}]} {
    %c0 = arith.constant 0 : index
    %c0_0 = arith.constant 0 : index
    %0 = vector.load %arg8[%c0, %c0_0] : memref<8x32xf32, #tpu.memory_space<vmem>>, vector<8x32xf32>
    %1 = vector.extract_strided_slice %0 {offsets = [4, 0], sizes = [1, 32], strides = [1, 1]} : vector<8x32xf32> to vector<1x32xf32>
    %c0_i32 = arith.constant 0 : i32
    %2 = arith.cmpi eq, %arg1, %c0_i32 : i32
    %3 = arith.extui %2 : i1 to i32
    %c0_i32_1 = arith.constant 0 : i32
    %4 = arith.cmpi ne, %3, %c0_i32_1 : i32
    scf.if %4 {
      %47 = vector.extract_strided_slice %0 {offsets = [0, 0], sizes = [1, 32], strides = [1, 1]} : vector<8x32xf32> to vector<1x32xf32>
      %48 = vector.extract_strided_slice %0 {offsets = [1, 0], sizes = [1, 32], strides = [1, 1]} : vector<8x32xf32> to vector<1x32xf32>
      %49 = vector.extract_strided_slice %0 {offsets = [2, 0], sizes = [1, 32], strides = [1, 1]} : vector<8x32xf32> to vector<1x32xf32>
      %50 = vector.extract_strided_slice %0 {offsets = [3, 0], sizes = [1, 32], strides = [1, 1]} : vector<8x32xf32> to vector<1x32xf32>
      %c0_27 = arith.constant 0 : index
      %c0_28 = arith.constant 0 : index
      %51 = vector.load %arg4[%c0_27, %c0_28] : memref<8x16xf32, #tpu.memory_space<vmem>>, vector<8x16xf32>
      %c0_29 = arith.constant 0 : index
      %c0_30 = arith.constant 0 : index
      %52 = vector.load %arg5[%c0_29, %c0_30] : memref<16x32xf32, #tpu.memory_space<vmem>>, vector<16x32xf32>
      %cst_31 = arith.constant dense<0.000000e+00> : vector<8x32xf32>
      %53 = tpu.matmul %51, %52, %cst_31 {dimension_numbers = #tpu.dot_dimension_numbers<[1], [0], [0], [1], [0, 0, 1, 1], [], []>} : vector<8x16xf32>, vector<16x32xf32>, vector<8x32xf32> -> vector<8x32xf32>
      %54 = vector.broadcast %47 : vector<1x32xf32> to vector<8x32xf32>
      %55 = arith.addf %53, %54 : vector<8x32xf32>
      %cst_32 = arith.constant 0.000000e+00 : f32
      %56 = vector.broadcast %cst_32 : f32 to vector<8x32xf32>
      %57 = arith.cmpf ogt, %55, %56 : vector<8x32xf32>
      %cst_33 = arith.constant 0.00999999977 : f32
      %58 = vector.broadcast %cst_33 : f32 to vector<8x32xf32>
      %59 = arith.mulf %58, %55 : vector<8x32xf32>
      %60 = arith.select %57, %55, %59 : vector<8x32xi1>, vector<8x32xf32>
      %c0_34 = arith.constant 0 : index
      %c0_35 = arith.constant 0 : index
      %61 = vector.load %arg6[%c0_34, %c0_35] : memref<32x32xf32, #tpu.memory_space<vmem>>, vector<32x32xf32>
      %cst_36 = arith.constant dense<0.000000e+00> : vector<8x32xf32>
      %62 = tpu.matmul %60, %61, %cst_36 {dimension_numbers = #tpu.dot_dimension_numbers<[1], [0], [0], [1], [0, 0, 1, 1], [], []>} : vector<8x32xf32>, vector<32x32xf32>, vector<8x32xf32> -> vector<8x32xf32>
      %63 = vector.broadcast %48 : vector<1x32xf32> to vector<8x32xf32>
      %64 = arith.addf %62, %63 : vector<8x32xf32>
      %cst_37 = arith.constant 0.000000e+00 : f32
      %65 = vector.broadcast %cst_37 : f32 to vector<8x32xf32>
      %66 = arith.cmpf ogt, %64, %65 : vector<8x32xf32>
      %cst_38 = arith.constant 0.00999999977 : f32
      %67 = vector.broadcast %cst_38 : f32 to vector<8x32xf32>
      %68 = arith.mulf %67, %64 : vector<8x32xf32>
      %69 = arith.select %66, %64, %68 : vector<8x32xi1>, vector<8x32xf32>
      %cst_39 = arith.constant dense<0.000000e+00> : vector<8xf32>
      %70 = vector.multi_reduction <add>, %69, %cst_39 [1] : vector<8x32xf32> to vector<8xf32>
      %71 = vector.shape_cast %70 : vector<8xf32> to vector<8x1xf32>
      %cst_40 = arith.constant 3.200000e+01 : f32
      %72 = vector.broadcast %cst_40 : f32 to vector<8x1xf32>
      %73 = arith.divf %71, %72 : vector<8x1xf32>
      %74 = vector.broadcast %73 : vector<8x1xf32> to vector<8x32xf32>
      %75 = arith.subf %69, %74 : vector<8x32xf32>
      %76 = vector.broadcast %73 : vector<8x1xf32> to vector<8x32xf32>
      %77 = arith.subf %69, %76 : vector<8x32xf32>
      %78 = arith.mulf %75, %77 : vector<8x32xf32>
      %cst_41 = arith.constant dense<0.000000e+00> : vector<8xf32>
      %79 = vector.multi_reduction <add>, %78, %cst_41 [1] : vector<8x32xf32> to vector<8xf32>
      %80 = vector.shape_cast %79 : vector<8xf32> to vector<8x1xf32>
      %cst_42 = arith.constant 3.200000e+01 : f32
      %81 = vector.broadcast %cst_42 : f32 to vector<8x1xf32>
      %82 = arith.divf %80, %81 : vector<8x1xf32>
      %83 = vector.broadcast %73 : vector<8x1xf32> to vector<8x32xf32>
      %84 = arith.subf %69, %83 : vector<8x32xf32>
      %cst_43 = arith.constant 9.99999974E-6 : f32
      %85 = vector.broadcast %cst_43 : f32 to vector<8x1xf32>
      %86 = arith.addf %82, %85 : vector<8x1xf32>
      %87 = math.rsqrt %86 : vector<8x1xf32>
      %88 = vector.broadcast %87 : vector<8x1xf32> to vector<8x32xf32>
      %89 = arith.mulf %84, %88 : vector<8x32xf32>
      %90 = vector.broadcast %49 : vector<1x32xf32> to vector<8x32xf32>
      %91 = arith.mulf %89, %90 : vector<8x32xf32>
      %92 = vector.broadcast %50 : vector<1x32xf32> to vector<8x32xf32>
      %93 = arith.addf %91, %92 : vector<8x32xf32>
      %94 = arith.truncf %93 : vector<8x32xf32> to vector<8x32xbf16>
      %c0_44 = arith.constant 0 : index
      %c0_45 = arith.constant 0 : index
      %95 = vector.load %arg7[%c0_44, %c0_45] : memref<32x32xbf16, #tpu.memory_space<vmem>>, vector<32x32xbf16>
      %cst_46 = arith.constant dense<0.000000e+00> : vector<8x32xf32>
      %96 = tpu.matmul %94, %95, %cst_46 {dimension_numbers = #tpu.dot_dimension_numbers<[1], [0], [0], [1], [0, 0, 1, 1], [], []>} : vector<8x32xbf16>, vector<32x32xbf16>, vector<8x32xf32> -> vector<8x32xf32>
      %97 = math.tanh %96 : vector<8x32xf32>
      %98 = vector.broadcast %1 : vector<1x32xf32> to vector<8x32xf32>
      %99 = arith.mulf %97, %98 : vector<8x32xf32>
      %cst_47 = arith.constant dense<0.000000e+00> : vector<8xf32>
      %100 = vector.multi_reduction <add>, %99, %cst_47 [1] : vector<8x32xf32> to vector<8xf32>
      %101 = vector.shape_cast %100 : vector<8xf32> to vector<8x1xf32>
      %c0_48 = arith.constant 0 : index
      %c0_49 = arith.constant 0 : index
      %102 = vector.load %arg10[%c0_48, %c0_49] : memref<8x1xf32, #tpu.memory_space<vmem>>, vector<8x1xf32>
      tpu.vector_store %arg10[%c0_48, %c0_49], %101 {strides = array<i32>} : memref<8x1xf32, #tpu.memory_space<vmem>>, vector<8x1xf32>,
      %cst_50 = arith.constant 1.000000e+00 : f32
      %103 = vector.broadcast %cst_50 : f32 to vector<8x1xf32>
      %c0_51 = arith.constant 0 : index
      %c0_52 = arith.constant 0 : index
      %104 = vector.load %arg11[%c0_51, %c0_52] : memref<8x1xf32, #tpu.memory_space<vmem>>, vector<8x1xf32>
      tpu.vector_store %arg11[%c0_51, %c0_52], %103 {strides = array<i32>} : memref<8x1xf32, #tpu.memory_space<vmem>>, vector<8x1xf32>,
      %c0_53 = arith.constant 0 : index
      %c0_54 = arith.constant 0 : index
      %105 = vector.load %arg12[%c0_53, %c0_54] : memref<8x32xf32, #tpu.memory_space<vmem>>, vector<8x32xf32>
      tpu.vector_store %arg12[%c0_53, %c0_54], %93 {strides = array<i32>} : memref<8x32xf32, #tpu.memory_space<vmem>>, vector<8x32xf32>,
    } else {
    }
    %c0_2 = arith.constant 0 : index
    %c0_3 = arith.constant 0 : index
    %c0_4 = arith.constant 0 : index
    %5 = vector.load %arg2[%c0_2, %c0_3, %c0_4] : memref<8x16x32xbf16, #tpu.memory_space<vmem>>, vector<8x16x32xbf16>
    %6 = vector.shape_cast %5 : vector<8x16x32xbf16> to vector<128x32xbf16>
    %c0_5 = arith.constant 0 : index
    %c0_6 = arith.constant 0 : index
    %7 = vector.load %arg7[%c0_5, %c0_6] : memref<32x32xbf16, #tpu.memory_space<vmem>>, vector<32x32xbf16>
    %cst = arith.constant dense<0.000000e+00> : vector<128x32xf32>
    %8 = tpu.matmul %6, %7, %cst {dimension_numbers = #tpu.dot_dimension_numbers<[1], [0], [0], [1], [0, 0, 1, 1], [], []>} : vector<128x32xbf16>, vector<32x32xbf16>, vector<128x32xf32> -> vector<128x32xf32>
    %9 = math.tanh %8 : vector<128x32xf32>
    %10 = vector.shape_cast %9 : vector<128x32xf32> to vector<8x16x32xf32>
    %11 = vector.shape_cast %1 : vector<1x32xf32> to vector<1x1x32xf32>
    %12 = vector.broadcast %11 : vector<1x1x32xf32> to vector<8x16x32xf32>
    %13 = arith.mulf %10, %12 : vector<8x16x32xf32>
    %cst_7 = arith.constant dense<0.000000e+00> : vector<8x16xf32>
    %14 = vector.multi_reduction <add>, %13, %cst_7 [2] : vector<8x16x32xf32> to vector<8x16xf32>
    %c0_8 = arith.constant 0 : index
    %c0_9 = arith.constant 0 : index
    %c0_10 = arith.constant 0 : index
    %15 = vector.load %arg3[%c0_8, %c0_9, %c0_10] : memref<1x8x16xf32, #tpu.memory_space<vmem>>, vector<1x8x16xf32>
    %16 = vector.shape_cast %15 : vector<1x8x16xf32> to vector<8x16xf32>
    %17 = arith.addf %14, %16 : vector<8x16xf32>
    %c0_11 = arith.constant 0 : index
    %c0_12 = arith.constant 0 : index
    %18 = vector.load %arg10[%c0_11, %c0_12] : memref<8x1xf32, #tpu.memory_space<vmem>>, vector<8x1xf32>
    %cst_13 = arith.constant dense<0xFF800000> : vector<8xf32>
    %19 = vector.multi_reduction <maximumf>, %17, %cst_13 [1] : vector<8x16xf32> to vector<8xf32>
    %20 = vector.shape_cast %19 : vector<8xf32> to vector<8x1xf32>
    %21 = arith.maximumf %18, %20 : vector<8x1xf32>
    %22 = arith.subf %18, %21 : vector<8x1xf32>
    %23 = math.exp %22 : vector<8x1xf32>
    %24 = vector.broadcast %21 : vector<8x1xf32> to vector<8x16xf32>
    %25 = arith.subf %17, %24 : vector<8x16xf32>
    %26 = math.exp %25 : vector<8x16xf32>
    %c0_14 = arith.constant 0 : index
    %c0_15 = arith.constant 0 : index
    %27 = vector.load %arg10[%c0_14, %c0_15] : memref<8x1xf32, #tpu.memory_space<vmem>>, vector<8x1xf32>
    tpu.vector_store %arg10[%c0_14, %c0_15], %21 {strides = array<i32>} : memref<8x1xf32, #tpu.memory_space<vmem>>, vector<8x1xf32>,
    %c0_16 = arith.constant 0 : index
    %c0_17 = arith.constant 0 : index
    %28 = vector.load %arg11[%c0_16, %c0_17] : memref<8x1xf32, #tpu.memory_space<vmem>>, vector<8x1xf32>
    %29 = arith.mulf %23, %28 : vector<8x1xf32>
    %cst_18 = arith.constant dense<0.000000e+00> : vector<8xf32>
    %30 = vector.multi_reduction <add>, %26, %cst_18 [1] : vector<8x16xf32> to vector<8xf32>
    %31 = vector.shape_cast %30 : vector<8xf32> to vector<8x1xf32>
    %32 = arith.addf %29, %31 : vector<8x1xf32>
    %c0_19 = arith.constant 0 : index
    %c0_20 = arith.constant 0 : index
    %33 = vector.load %arg11[%c0_19, %c0_20] : memref<8x1xf32, #tpu.memory_space<vmem>>, vector<8x1xf32>
    tpu.vector_store %arg11[%c0_19, %c0_20], %32 {strides = array<i32>} : memref<8x1xf32, #tpu.memory_space<vmem>>, vector<8x1xf32>,
    %c0_21 = arith.constant 0 : index
    %c0_22 = arith.constant 0 : index
    %34 = vector.load %arg12[%c0_21, %c0_22] : memref<8x32xf32, #tpu.memory_space<vmem>>, vector<8x32xf32>
    %35 = vector.broadcast %23 : vector<8x1xf32> to vector<8x32xf32>
    %36 = arith.mulf %35, %34 : vector<8x32xf32>
    %37 = vector.shape_cast %26 : vector<8x16xf32> to vector<8x16x1xf32>
    %38 = arith.extf %5 : vector<8x16x32xbf16> to vector<8x16x32xf32>
    %39 = vector.broadcast %37 : vector<8x16x1xf32> to vector<8x16x32xf32>
    %40 = arith.mulf %39, %38 : vector<8x16x32xf32>
    %cst_23 = arith.constant dense<0.000000e+00> : vector<8x32xf32>
    %41 = vector.multi_reduction <add>, %40, %cst_23 [1] : vector<8x16x32xf32> to vector<8x32xf32>
    %42 = arith.addf %36, %41 : vector<8x32xf32>
    %c0_24 = arith.constant 0 : index
    %c0_25 = arith.constant 0 : index
    %43 = vector.load %arg12[%c0_24, %c0_25] : memref<8x32xf32, #tpu.memory_space<vmem>>, vector<8x32xf32>
    tpu.vector_store %arg12[%c0_24, %c0_25], %42 {strides = array<i32>} : memref<8x32xf32, #tpu.memory_space<vmem>>, vector<8x32xf32>,
    %c1_i32 = arith.constant 1 : i32
    %44 = arith.cmpi eq, %arg1, %c1_i32 : i32
    %45 = arith.extui %44 : i1 to i32
    %c0_i32_26 = arith.constant 0 : i32
    %46 = arith.cmpi ne, %45, %c0_i32_26 : i32
    scf.if %46 {
      %c0_27 = arith.constant 0 : index
      %c0_28 = arith.constant 0 : index
      %47 = vector.load %arg12[%c0_27, %c0_28] : memref<8x32xf32, #tpu.memory_space<vmem>>, vector<8x32xf32>
      %c0_29 = arith.constant 0 : index
      %c0_30 = arith.constant 0 : index
      %48 = vector.load %arg11[%c0_29, %c0_30] : memref<8x1xf32, #tpu.memory_space<vmem>>, vector<8x1xf32>
      %49 = tpu.reciprocal %48 {approx = true} : vector<8x1xf32> -> vector<8x1xf32>
      %50 = vector.broadcast %49 : vector<8x1xf32> to vector<8x32xf32>
      %51 = arith.mulf %47, %50 : vector<8x32xf32>
      %c0_31 = arith.constant 0 : index
      %c0_32 = arith.constant 0 : index
      %52 = vector.load %arg9[%c0_31, %c0_32] : memref<8x32xf32, #tpu.memory_space<vmem>>, vector<8x32xf32>
      tpu.vector_store %arg9[%c0_31, %c0_32], %51 {strides = array<i32>} : memref<8x32xf32, #tpu.memory_space<vmem>>, vector<8x32xf32>,
    } else {
    }
    return
  }
  func.func @transform_0(%arg0: i32, %arg1: i32) -> (i32, i32, i32) {
    %c0_i32 = arith.constant 0 : i32
    %c0_i32_0 = arith.constant 0 : i32
    return %arg0, %arg1, %c0_i32 : i32, i32, i32
  }
  func.func @transform_1(%arg0: i32, %arg1: i32) -> (i32, i32, i32) {
    %c0_i32 = arith.constant 0 : i32
    %c0_i32_0 = arith.constant 0 : i32
    return %arg1, %arg0, %c0_i32 : i32, i32, i32
  }
  func.func @transform_2(%arg0: i32, %arg1: i32) -> (i32, i32) {
    %c0_i32 = arith.constant 0 : i32
    %c0_i32_0 = arith.constant 0 : i32
    return %arg0, %c0_i32 : i32, i32
  }
  func.func @transform_3(%arg0: i32, %arg1: i32) -> (i32, i32) {
    %c0_i32 = arith.constant 0 : i32
    %c0_i32_0 = arith.constant 0 : i32
    %c0_i32_1 = arith.constant 0 : i32
    return %c0_i32, %c0_i32_0 : i32, i32
  }
  func.func @transform_4(%arg0: i32, %arg1: i32) -> (i32, i32) {
    %c0_i32 = arith.constant 0 : i32
    %c0_i32_0 = arith.constant 0 : i32
    %c0_i32_1 = arith.constant 0 : i32
    return %c0_i32, %c0_i32_0 : i32, i32
  }
  func.func @transform_5(%arg0: i32, %arg1: i32) -> (i32, i32) {
    %c0_i32 = arith.constant 0 : i32
    %c0_i32_0 = arith.constant 0 : i32
    %c0_i32_1 = arith.constant 0 : i32
    return %c0_i32, %c0_i32_0 : i32, i32
  }
  func.func @transform_6(%arg0: i32, %arg1: i32) -> (i32, i32) {
    %c0_i32 = arith.constant 0 : i32
    %c0_i32_0 = arith.constant 0 : i32
    %c0_i32_1 = arith.constant 0 : i32
    return %c0_i32, %c0_i32_0 : i32, i32
  }
  func.func @transform_7(%arg0: i32, %arg1: i32) -> (i32, i32) {
    %c0_i32 = arith.constant 0 : i32
    %c0_i32_0 = arith.constant 0 : i32
    return %arg0, %c0_i32 : i32, i32
  }
}

</mosaic_0001>

<llo_original>
// kernel: tpu_custom_call.1
$region0: #{tpu_custom_call.1}
  #allocation0 [shape = 'u32[]', space=smem, size = 0x4, offset = 0x4, fixed_abs, tag = 'smem constant byte address 0x4 - core index']
  #allocation1 [shape = 'u32[144,128]{1,0:T(1,128)}', space=vmem, size = 0x12000, scoped, tag = 'internal scratch']
  #allocation2 [shape = 'f32[8,1]{1,0:T(8,128)}', space=vmem, size = 0x1000, scoped, tag = 'scratch operand']
  #allocation3 [shape = 'f32[8,1]{1,0:T(8,128)}', space=vmem, size = 0x1000, scoped, tag = 'scratch operand']
  #allocation4 [shape = 'f32[8,32]{1,0:T(8,128)}', space=vmem, size = 0x1000, scoped, tag = 'scratch operand']
  #allocation17 [shape = 's32[]', space=sflag, size = 0x4, offset = 0, fixed_abs, tag = 'sflag constant byte address 0x0 - dummy sync flag']
  %s0 = inlined_call_operand.hbm [shape: bf16[16,32,32], index: 0, kind: input, shape index: {}]
  %s1 = inlined_call_operand.hbm [shape: f32[2,16,16], index: 1, kind: input, shape index: {}]
  %s2 = inlined_call_operand.hbm [shape: f32[16,16], index: 2, kind: input, shape index: {}]
  %s3 = inlined_call_operand.hbm [shape: f32[16,32], index: 3, kind: input, shape index: {}]
  %s4 = inlined_call_operand.hbm [shape: f32[32,32], index: 4, kind: input, shape index: {}]
  %s5 = inlined_call_operand.vmem [shape: bf16[32,32], index: 5, kind: input, shape index: {}]
  %s6 = inlined_call_operand.hbm [shape: f32[8,32], index: 6, kind: input, shape index: {}]
  %s7 = inlined_call_operand.hbm [shape: f32[16,32], index: 7, kind: output, shape index: {}]
  %s8 = sld [smem:[#allocation0]]
  $region93: #{tpu_custom_call.1} parent=0
    _
  %s10 = ssub.s32 1, %s8
  %s11 = scalar_select 0, %s10, %s8
  $region1: #{tpu_custom_call.1} parent=0
    #allocation5 [shape = 'u8[65536]{0}', space=vmem, size = 0x10000, scoped, tag = 'input window, operand 0']
    #allocation6 [shape = 's32[2]{0}', space=sflag, size = 0x8, scoped, tag = 'scoped memory for tpu_custom_call.1']
    #allocation7 [shape = 's32[2]{0}', space=sflag, size = 0x8, scoped, tag = 'scoped memory for tpu_custom_call.1']
    #allocation8 [shape = 'u8[8192]{0}', space=vmem, size = 0x2000, scoped, tag = 'input window, operand 1']
    #allocation9 [shape = 's32[2]{0}', space=sflag, size = 0x8, scoped, tag = 'scoped memory for tpu_custom_call.1']
    #allocation10 [shape = 'u8[8192]{0}', space=vmem, size = 0x2000, scoped, tag = 'input window, operand 2']
    #allocation11 [shape = 'u8[8192]{0}', space=vmem, size = 0x2000, scoped, tag = 'input window, operand 3, single buffered']
    #allocation12 [shape = 's32[1]{0}', space=sflag, size = 0x4, scoped, tag = 'scoped memory for tpu_custom_call.1']
    #allocation13 [shape = 'u8[16384]{0}', space=vmem, size = 0x4000, scoped, tag = 'input window, operand 4, single buffered']
    #allocation14 [shape = 'u8[4096]{0}', space=vmem, size = 0x1000, scoped, tag = 'input window, operand 6, single buffered']
    #allocation15 [shape = 's32[1]{0}', space=sflag, size = 0x4, scoped, tag = 'scoped memory for tpu_custom_call.1']
    #allocation16 [shape = 'u8[8192]{0}', space=vmem, size = 0x2000, scoped, tag = 'output window, operand 0']
    %12 = vsyncpa [#allocation6], 0
    %s13 = scalar_lea.sflag [#allocation6], 1
    %14 = vsyncpa %s13, 0
    %15 = vsyncpa [#allocation9], 0
    %s16 = scalar_lea.sflag [#allocation9], 1
    %17 = vsyncpa %s16, 0
    %18 = vsyncpa [#allocation12], 0
    %19 = vsyncpa [#allocation15], 0
    %20 = vsyncpa [#allocation7], 0
    %s21 = scalar_lea.sflag [#allocation7], 1
    %22 = vsyncpa %s21, 0
    loop: start=0, step=1, limit=6
    $region2: #{tpu_custom_call.1} parent=1 // loop_pre_header
      _
    $region3: #{tpu_custom_call.1} parent=1 // loop_header
      %s24 = sphi 0, %s28
      %p25 = scmp.ge.s32.totalorder %s24, 6
      %s31 = sphi 0, %s43
      %s32 = sphi 0, %s39
      %s33 = sphi 0, %s31
      %s34 = sphi 0, %s32
      %s35 = sphi 0, %s33
      %s36 = sphi 0, %s34
      %s48 = sphi 0, %s50
      %s51 = sphi 0, %s48
      %s52 = sphi 0, %s51
      %s68 = sphi 0, %s52
      %s76 = sphi 0, %s78
      %s79 = sphi 0, %s76
      %s80 = sphi 0, %s79
      %s96 = sphi 0, %s80
      %s102 = sphi 0, %s104
      %s105 = sphi 0, %s102
      %s106 = sphi 0, %s105
      %s122 = sphi 0, %s106
      %s126 = sphi 0, %s126
      %s128 = sphi 0, %s126
      %s129 = sphi 0, %s128
      %s143 = sphi 0, %s129
      %s147 = sphi 0, %s147
      %s149 = sphi 0, %s147
      %s150 = sphi 0, %s149
      %s164 = sphi 0, %s150
      %s168 = sphi 0, %s168
      %s170 = sphi 0, %s168
      %s171 = sphi 0, %s170
      %s185 = sphi 0, %s171
      %s189 = sphi 0, %s189
      %s191 = sphi 0, %s189
      %s192 = sphi 0, %s191
      %s206 = sphi 0, %s192
      %s212 = sphi 0, %s214
      %s215 = sphi 0, %s212
      %s216 = sphi 0, %s215
      %s232 = sphi 0, %s216
    $region4: #{tpu_custom_call.1} parent=1 // loop_header_branch
      %27 = sbr.rel (%p25) target = $region8
    $region5: #{tpu_custom_call.1} parent=1 // loop_body
      %s29 = ssub.s32 %s24, 1
      %s30 = ssub.s32 %s24, 2
      %s37 = sadd.s32 1, %s32
      %p38 = scmp.ge.s32.totalorder %s37, 2
      %s39 = scalar_select %p38, 0, %s37
      %s40 = sadd.s32 1, %s31
      %s41 = scalar_select %p38, %s40, %s31
      %p42 = scmp.ge.s32.totalorder %s41, 2
      %s43 = scalar_select %p42, 0, %s41
      %s44 = ssub.s32 %s31, %s43
      %s45 = ssub.s32 %s32, %s39
      %s46 = sor.u32 %s44, %s45
      %p47 = scmp.eq.s32.totalorder %s46, 0
      %s49 = sadd.s32 %s48, 1
      %s50 = scalar_select %p47, %s48, %s49
      %p53 = pneg %p47
      %p54 = scmp.eq.s32.totalorder %s24, 3
      %p55 = por %p53, %p54
      %p56 = scmp.ne.s32.totalorder %s48, %s51
      %p57 = scmp.eq.s32.totalorder %s24, 0
      %p58 = por %p56, %p57
      %p59 = scmp.ne.s32.totalorder %s48, %s51
      %p60 = scmp.eq.s32.totalorder %s29, 3
      %p61 = por %p59, %p60
      %p62 = scmp.ne.s32.totalorder %s51, %s52
      %p63 = scmp.eq.s32.totalorder %s29, 0
      %p64 = por %p62, %p63
      %p65 = scmp.ne.s32.totalorder %s51, %s52
      %p66 = scmp.eq.s32.totalorder %s30, 3
      %p67 = por %p65, %p66
      %p69 = scmp.ne.s32.totalorder %s52, %s68
      %p70 = scmp.eq.s32.totalorder %s30, 0
      %p71 = por %p69, %p70
      %s72 = ssub.s32 %s32, %s39
      %s73 = ssub.s32 %s31, %s43
      %s74 = sor.u32 %s72, %s73
      %p75 = scmp.eq.s32.totalorder %s74, 0
      %s77 = sadd.s32 %s76, 1
      %s78 = scalar_select %p75, %s76, %s77
      %p81 = pneg %p75
      %p82 = scmp.eq.s32.totalorder %s24, 3
      %p83 = por %p81, %p82
      %p84 = scmp.ne.s32.totalorder %s76, %s79
      %p85 = scmp.eq.s32.totalorder %s24, 0
      %p86 = por %p84, %p85
      %p87 = scmp.ne.s32.totalorder %s76, %s79
      %p88 = scmp.eq.s32.totalorder %s29, 3
      %p89 = por %p87, %p88
      %p90 = scmp.ne.s32.totalorder %s79, %s80
      %p91 = scmp.eq.s32.totalorder %s29, 0
      %p92 = por %p90, %p91
      %p93 = scmp.ne.s32.totalorder %s79, %s80
      %p94 = scmp.eq.s32.totalorder %s30, 3
      %p95 = por %p93, %p94
      %p97 = scmp.ne.s32.totalorder %s80, %s96
      %p98 = scmp.eq.s32.totalorder %s30, 0
      %p99 = por %p97, %p98
      %s100 = ssub.s32 %s31, %s43
      %p101 = scmp.eq.s32.totalorder %s100, 0
      %s103 = sadd.s32 %s102, 1
      %s104 = scalar_select %p101, %s102, %s103
      %p107 = pneg %p101
      %p108 = scmp.eq.s32.totalorder %s24, 3
      %p109 = por %p107, %p108
      %p110 = scmp.ne.s32.totalorder %s102, %s105
      %p111 = scmp.eq.s32.totalorder %s24, 0
      %p112 = por %p110, %p111
      %p113 = scmp.ne.s32.totalorder %s102, %s105
      %p114 = scmp.eq.s32.totalorder %s29, 3
      %p115 = por %p113, %p114
      %p116 = scmp.ne.s32.totalorder %s105, %s106
      %p117 = scmp.eq.s32.totalorder %s29, 0
      %p118 = por %p116, %p117
      %p119 = scmp.ne.s32.totalorder %s105, %s106
      %p120 = scmp.eq.s32.totalorder %s30, 3
      %p121 = por %p119, %p120
      %p123 = scmp.ne.s32.totalorder %s106, %s122
      %p124 = scmp.eq.s32.totalorder %s30, 0
      %p125 = por %p123, %p124
      %s127 = sadd.s32 %s126, 1
      %p130 = scmp.eq.s32.totalorder %s24, 3
      %p131 = scmp.ne.s32.totalorder %s126, %s128
      %p132 = scmp.eq.s32.totalorder %s24, 0
      %p133 = por %p131, %p132
      %p134 = scmp.ne.s32.totalorder %s126, %s128
      %p135 = scmp.eq.s32.totalorder %s29, 3
      %p136 = por %p134, %p135
      %p137 = scmp.ne.s32.totalorder %s128, %s129
      %p138 = scmp.eq.s32.totalorder %s29, 0
      %p139 = por %p137, %p138
      %p140 = scmp.ne.s32.totalorder %s128, %s129
      %p141 = scmp.eq.s32.totalorder %s30, 3
      %p142 = por %p140, %p141
      %p144 = scmp.ne.s32.totalorder %s129, %s143
      %p145 = scmp.eq.s32.totalorder %s30, 0
      %p146 = por %p144, %p145
      %s148 = sadd.s32 %s147, 1
      %p151 = scmp.eq.s32.totalorder %s24, 3
      %p152 = scmp.ne.s32.totalorder %s147, %s149
      %p153 = scmp.eq.s32.totalorder %s24, 0
      %p154 = por %p152, %p153
      %p155 = scmp.ne.s32.totalorder %s147, %s149
      %p156 = scmp.eq.s32.totalorder %s29, 3
      %p157 = por %p155, %p156
      %p158 = scmp.ne.s32.totalorder %s149, %s150
      %p159 = scmp.eq.s32.totalorder %s29, 0
      %p160 = por %p158, %p159
      %p161 = scmp.ne.s32.totalorder %s149, %s150
      %p162 = scmp.eq.s32.totalorder %s30, 3
      %p163 = por %p161, %p162
      %p165 = scmp.ne.s32.totalorder %s150, %s164
      %p166 = scmp.eq.s32.totalorder %s30, 0
      %p167 = por %p165, %p166
      %s169 = sadd.s32 %s168, 1
      %p172 = scmp.eq.s32.totalorder %s24, 3
      %p173 = scmp.ne.s32.totalorder %s168, %s170
      %p174 = scmp.eq.s32.totalorder %s24, 0
      %p175 = por %p173, %p174
      %p176 = scmp.ne.s32.totalorder %s168, %s170
      %p177 = scmp.eq.s32.totalorder %s29, 3
      %p178 = por %p176, %p177
      %p179 = scmp.ne.s32.totalorder %s170, %s171
      %p180 = scmp.eq.s32.totalorder %s29, 0
      %p181 = por %p179, %p180
      %p182 = scmp.ne.s32.totalorder %s170, %s171
      %p183 = scmp.eq.s32.totalorder %s30, 3
      %p184 = por %p182, %p183
      %p186 = scmp.ne.s32.totalorder %s171, %s185
      %p187 = scmp.eq.s32.totalorder %s30, 0
      %p188 = por %p186, %p187
      %s190 = sadd.s32 %s189, 1
      %p193 = scmp.eq.s32.totalorder %s24, 3
      %p194 = scmp.ne.s32.totalorder %s189, %s191
      %p195 = scmp.eq.s32.totalorder %s24, 0
      %p196 = por %p194, %p195
      %p197 = scmp.ne.s32.totalorder %s189, %s191
      %p198 = scmp.eq.s32.totalorder %s29, 3
      %p199 = por %p197, %p198
      %p200 = scmp.ne.s32.totalorder %s191, %s192
      %p201 = scmp.eq.s32.totalorder %s29, 0
      %p202 = por %p200, %p201
      %p203 = scmp.ne.s32.totalorder %s191, %s192
      %p204 = scmp.eq.s32.totalorder %s30, 3
      %p205 = por %p203, %p204
      %p207 = scmp.ne.s32.totalorder %s192, %s206
      %p208 = scmp.eq.s32.totalorder %s30, 0
      %p209 = por %p207, %p208
      %s210 = ssub.s32 %s31, %s43
      %p211 = scmp.eq.s32.totalorder %s210, 0
      %s213 = sadd.s32 %s212, 1
      %s214 = scalar_select %p211, %s212, %s213
      %p217 = pneg %p211
      %p218 = scmp.eq.s32.totalorder %s24, 3
      %p219 = por %p217, %p218
      %p220 = scmp.ne.s32.totalorder %s212, %s215
      %p221 = scmp.eq.s32.totalorder %s24, 0
      %p222 = por %p220, %p221
      %p223 = scmp.ne.s32.totalorder %s212, %s215
      %p224 = scmp.eq.s32.totalorder %s29, 3
      %p225 = por %p223, %p224
      %p226 = scmp.ne.s32.totalorder %s215, %s216
      %p227 = scmp.eq.s32.totalorder %s29, 0
      %p228 = por %p226, %p227
      %p229 = scmp.ne.s32.totalorder %s215, %s216
      %p230 = scmp.eq.s32.totalorder %s30, 3
      %p231 = por %p229, %p230
      %p233 = scmp.ne.s32.totalorder %s216, %s232
      %p234 = scmp.eq.s32.totalorder %s30, 0
      %p235 = por %p233, %p234
      %p236 = scmp.le.s32.totalorder 1, %s24
      %p237 = scmp.lt.s32.totalorder %s24, 5
      %p238 = pnand %p236, %p237
      %p239 = pneg %p238
      // Predicated region
      $region9: #{tpu_custom_call.1} parent=5 // pred_check
        _
      $region10: #{tpu_custom_call.1} parent=5 // pred_check_branch
        %241 = sbr.rel (%p238) target = $region12
      $region11: #{tpu_custom_call.1} parent=5 // pred_region
        %s242 = ssub.s32 %s24, 1
        // Predicated region
        $region13: #{tpu_custom_call.1} parent=11 // pred_check
          %p243 = pneg %p139
        $region14: #{tpu_custom_call.1} parent=11 // pred_check_branch
          %245 = sbr.rel (%p243) target = $region16
        $region15: #{tpu_custom_call.1} parent=11 // pred_region
          %s247 = ssub.s32 256, 256
          %248 = vsyncadd [#allocation12], %s247
          %s249 = sshll.u32 [#allocation11], 4
          %s250 = int_to_ptr.vmem [resolvable:$true] %s249
          %255 = dma.hbm_to_vmem [thread:$0]  %s3, 256, %s250, [#allocation12], 128, 128, 8
        $region16: #{tpu_custom_call.1} parent=11 // pred_fallthru
          _
        // Predicated region
        $region17: #{tpu_custom_call.1} parent=11 // pred_check
          %p256 = pneg %p160
        $region18: #{tpu_custom_call.1} parent=11 // pred_check_branch
          %258 = sbr.rel (%p256) target = $region20
        $region19: #{tpu_custom_call.1} parent=11 // pred_region
          %s260 = ssub.s32 512, 512
          %261 = vsyncadd [#allocation12], %s260
          %s262 = sshll.u32 [#allocation13], 4
          %s263 = int_to_ptr.vmem [resolvable:$true] %s262
          %268 = dma.hbm_to_vmem [thread:$0]  %s4, 512, %s263, [#allocation12], 128, 128, 8
        $region20: #{tpu_custom_call.1} parent=11 // pred_fallthru
          _
        // Predicated region
        $region21: #{tpu_custom_call.1} parent=11 // pred_check
          %p269 = pneg %p181
        $region22: #{tpu_custom_call.1} parent=11 // pred_check_branch
          %271 = sbr.rel (%p269) target = $region24
        $region23: #{tpu_custom_call.1} parent=11 // pred_region
          _
        $region24: #{tpu_custom_call.1} parent=11 // pred_fallthru
          _
        // Predicated region
        $region25: #{tpu_custom_call.1} parent=11 // pred_check
          %p272 = pneg %p202
        $region26: #{tpu_custom_call.1} parent=11 // pred_check_branch
          %274 = sbr.rel (%p272) target = $region28
        $region27: #{tpu_custom_call.1} parent=11 // pred_region
          %s276 = ssub.s32 128, 128
          %277 = vsyncadd [#allocation15], %s276
          %s279 = sshll.u32 [#allocation14], 4
          %s280 = int_to_ptr.vmem [resolvable:$true] %s279
          %282 = dma.hbm_to_vmem [thread:$0]  %s6, 128, %s280, [#allocation15]
        $region28: #{tpu_custom_call.1} parent=11 // pred_fallthru
          _
      $region12: #{tpu_custom_call.1} parent=5 // pred_fallthru
        _
      %p283 = scmp.lt.s32.totalorder %s24, 4
      // Predicated region
      $region29: #{tpu_custom_call.1} parent=5 // pred_check
        %p284 = pneg %p283
      $region30: #{tpu_custom_call.1} parent=5 // pred_check_branch
        %286 = sbr.rel (%p284) target = $region32
      $region31: #{tpu_custom_call.1} parent=5 // pred_region
        // Predicated region
        $region33: #{tpu_custom_call.1} parent=31 // pred_check
          %p287 = pneg %p58
        $region34: #{tpu_custom_call.1} parent=31 // pred_check_branch
          %289 = sbr.rel (%p287) target = $region36
        $region35: #{tpu_custom_call.1} parent=31 // pred_region
          #allocation18 [shape = 'u32[6]{0}', space=smem, size = 0x18, scoped, tag = 'DMA stride descriptor']
          %s290 = sand.u32 %s48, 1
          %s291 = scalar_lea.sflag [#allocation6], %s290
          %s292 = sand.u32 %s48, 1
          %s293 = smul.addr %s292, 64
          %s294 = scalar_lea.vmem [#allocation5], %s293
          %s295 = smul.u32 8, %s31
          %s296 = smul.u32 2, %s32
          %s298 = ssub.s32 1024, 1024
          %299 = vsyncadd %s291, %s298
          %s300 = smul.addr %s295, 4
          %s301 = sadd.s32 %s296, %s300
          %s302 = smul.addr %s301, 64
          %s303 = scalar_lea.hbm %s0, %s302
          %s305 = sshll.u32 1, 14
          %s306 = sxor.u32 4294967295, %s305
          %s308 = sld [smem:[#allocation0]]
          %s309 = sadd.s32 2, %s308
          %s311 = sshll.u32 7, 26
          %s312 = sxor.u32 4294967295, %s311
          %s313 = sand.u32 0, %s312
          %s314 = sshll.u32 %s309, 26
          %s315 = sor.u32 %s313, %s314
          %s316 = sshll.u32 %s294, 4
          %s317 = int_to_ptr.vmem [resolvable:$true] %s316
          %323 = sst [smem:[#allocation18]] 256
          %s324 = scalar_lea.smem [#allocation18], 1
          %325 = sst [smem:[%s324]] 128
          %s326 = scalar_lea.smem [#allocation18], 2
          %327 = sst [smem:[%s326]] 2
          %s328 = scalar_lea.smem [#allocation18], 3
          %329 = sst [smem:[%s328]] 64
          %s330 = scalar_lea.smem [#allocation18], 4
          %331 = sst [smem:[%s330]] 64
          %s332 = scalar_lea.smem [#allocation18], 5
          %333 = sst [smem:[%s332]] 4
          %335 = dma.general %s303, 1024, %s317, %s291, [#allocation17], [#allocation18], %s315, 0
        $region36: #{tpu_custom_call.1} parent=31 // pred_fallthru
          _
        // Predicated region
        $region37: #{tpu_custom_call.1} parent=31 // pred_check
          %p336 = pneg %p86
        $region38: #{tpu_custom_call.1} parent=31 // pred_check_branch
          %338 = sbr.rel (%p336) target = $region40
        $region39: #{tpu_custom_call.1} parent=31 // pred_region
          %s339 = sand.u32 %s24, 1
          %s340 = scalar_lea.sflag [#allocation9], %s339
          %s341 = sand.u32 %s76, 1
          %s342 = smul.addr %s341, 8
          %s343 = scalar_lea.vmem [#allocation8], %s342
          %s345 = ssub.s32 128, 128
          %346 = vsyncadd %s340, %s345
          %s347 = smul.addr %s32, 2
          %s348 = sadd.s32 %s31, %s347
          %s349 = smul.addr %s348, 128
          %s350 = scalar_lea.hbm %s1, %s349
          %s352 = sshll.u32 %s343, 4
          %s353 = int_to_ptr.vmem [resolvable:$true] %s352
          %355 = dma.hbm_to_vmem [thread:$0]  %s350, 128, %s353, %s340
        $region40: #{tpu_custom_call.1} parent=31 // pred_fallthru
          _
        // Predicated region
        $region41: #{tpu_custom_call.1} parent=31 // pred_check
          %p356 = pneg %p112
        $region42: #{tpu_custom_call.1} parent=31 // pred_check_branch
          %358 = sbr.rel (%p356) target = $region44
        $region43: #{tpu_custom_call.1} parent=31 // pred_region
          %s359 = sand.u32 %s24, 1
          %s360 = scalar_lea.sflag [#allocation9], %s359
          %s361 = sand.u32 %s102, 1
          %s362 = smul.addr %s361, 8
          %s363 = scalar_lea.vmem [#allocation10], %s362
          %s365 = ssub.s32 128, 128
          %366 = vsyncadd %s360, %s365
          %s367 = smul.addr %s31, 128
          %s368 = scalar_lea.hbm %s2, %s367
          %s370 = sshll.u32 %s363, 4
          %s371 = int_to_ptr.vmem [resolvable:$true] %s370
          %373 = dma.hbm_to_vmem [thread:$0]  %s368, 128, %s371, %s360
        $region44: #{tpu_custom_call.1} parent=31 // pred_fallthru
          _
      $region32: #{tpu_custom_call.1} parent=5 // pred_fallthru
        _
      %p374 = scmp.le.s32.totalorder 1, %s24
      %p375 = scmp.lt.s32.totalorder %s24, 5
      %p376 = pnand %p374, %p375
      %p377 = pneg %p376
      // Predicated region
      $region45: #{tpu_custom_call.1} parent=5 // pred_check
        _
      $region46: #{tpu_custom_call.1} parent=5 // pred_check_branch
        %379 = sbr.rel (%p376) target = $region48
      $region47: #{tpu_custom_call.1} parent=5 // pred_region
        %s380 = ssub.s32 %s24, 1
        %s381 = sand.u32 %s51, 1
        %s382 = scalar_lea.sflag [#allocation6], %s381
        %s383 = sand.u32 %s51, 1
        %s384 = smul.addr %s383, 64
        %s385 = scalar_lea.vmem [#allocation5], %s384
        // Predicated region
        $region49: #{tpu_custom_call.1} parent=47 // pred_check
          %p386 = pneg %p64
        $region50: #{tpu_custom_call.1} parent=47 // pred_check_branch
          %388 = sbr.rel (%p386) target = $region52
        $region51: #{tpu_custom_call.1} parent=47 // pred_region
          %389 = dma.done %s382, 1024
        $region52: #{tpu_custom_call.1} parent=47 // pred_fallthru
          _
        %s390 = sand.u32 %s29, 1
        %s391 = scalar_lea.sflag [#allocation9], %s390
        %s392 = sand.u32 %s79, 1
        %s393 = smul.addr %s392, 8
        %s394 = scalar_lea.vmem [#allocation8], %s393
        // Predicated region
        $region53: #{tpu_custom_call.1} parent=47 // pred_check
          %p395 = pneg %p92
        $region54: #{tpu_custom_call.1} parent=47 // pred_check_branch
          %397 = sbr.rel (%p395) target = $region56
        $region55: #{tpu_custom_call.1} parent=47 // pred_region
          %398 = dma.done %s391, 128
        $region56: #{tpu_custom_call.1} parent=47 // pred_fallthru
          _
        %s399 = sand.u32 %s29, 1
        %s400 = scalar_lea.sflag [#allocation9], %s399
        %s401 = sand.u32 %s105, 1
        %s402 = smul.addr %s401, 8
        %s403 = scalar_lea.vmem [#allocation10], %s402
        // Predicated region
        $region57: #{tpu_custom_call.1} parent=47 // pred_check
          %p404 = pneg %p118
        $region58: #{tpu_custom_call.1} parent=47 // pred_check_branch
          %406 = sbr.rel (%p404) target = $region60
        $region59: #{tpu_custom_call.1} parent=47 // pred_region
          %407 = dma.done %s400, 128
        $region60: #{tpu_custom_call.1} parent=47 // pred_fallthru
          _
        // Predicated region
        $region61: #{tpu_custom_call.1} parent=47 // pred_check
          %p408 = pneg %p139
        $region62: #{tpu_custom_call.1} parent=47 // pred_check_branch
          %410 = sbr.rel (%p408) target = $region64
        $region63: #{tpu_custom_call.1} parent=47 // pred_region
          %411 = dma.done [#allocation12], 256
        $region64: #{tpu_custom_call.1} parent=47 // pred_fallthru
          _
        // Predicated region
        $region65: #{tpu_custom_call.1} parent=47 // pred_check
          %p412 = pneg %p160
        $region66: #{tpu_custom_call.1} parent=47 // pred_check_branch
          %414 = sbr.rel (%p412) target = $region68
        $region67: #{tpu_custom_call.1} parent=47 // pred_region
          %415 = dma.done [#allocation12], 512
        $region68: #{tpu_custom_call.1} parent=47 // pred_fallthru
          _
        // Predicated region
        $region69: #{tpu_custom_call.1} parent=47 // pred_check
          %p416 = pneg %p202
        $region70: #{tpu_custom_call.1} parent=47 // pred_check_branch
          %418 = sbr.rel (%p416) target = $region72
        $region71: #{tpu_custom_call.1} parent=47 // pred_region
          %419 = dma.done [#allocation15], 128
        $region72: #{tpu_custom_call.1} parent=47 // pred_fallthru
          _
        %s420 = sand.u32 %s51, 1
        %s421 = scalar_lea.sflag [#allocation6], %s420
        %s422 = sand.u32 %s51, 1
        %s423 = smul.addr %s422, 64
        %s424 = scalar_lea.vmem [#allocation5], %s423
        %p425 = pneg %p64
        %p426 = pneg %p61
        %s427 = sand.u32 %s29, 1
        %s428 = scalar_lea.sflag [#allocation9], %s427
        %s429 = sand.u32 %s79, 1
        %s430 = smul.addr %s429, 8
        %s431 = scalar_lea.vmem [#allocation8], %s430
        %p432 = pneg %p92
        %p433 = pneg %p89
        %s434 = sand.u32 %s29, 1
        %s435 = scalar_lea.sflag [#allocation9], %s434
        %s436 = sand.u32 %s105, 1
        %s437 = smul.addr %s436, 8
        %s438 = scalar_lea.vmem [#allocation10], %s437
        %p439 = pneg %p118
        %p440 = pneg %p115
        %p441 = pneg %p139
        %p442 = pneg %p136
        %p443 = pneg %p160
        %p444 = pneg %p157
        %p445 = pneg %p181
        %p446 = pneg %p178
        %p447 = pneg %p202
        %p448 = pneg %p199
        %p449 = pneg %p228
        %p450 = pneg %p225
        %s451 = sand.u32 %s215, 1
        %s452 = scalar_lea.sflag [#allocation7], %s451
        %s453 = sand.u32 %s215, 1
        %s454 = smul.addr %s453, 8
        %s455 = scalar_lea.vmem [#allocation16], %s454
        %s456 = smul.u32 8, %s33
        %s457 = smul.u32 2, %s34
        %v459 = vld [vmem:[#allocation14] sm:$0xff]
        %p460 = scmp.eq.s32.totalorder %s34, 0
        // Predicated region
        $region73: #{tpu_custom_call.1} parent=47 // pred_check
          %p461 = pneg %p460
        $region74: #{tpu_custom_call.1} parent=47 // pred_check_branch
          %463 = sbr.rel (%p461) target = $region76
        $region75: #{tpu_custom_call.1} parent=47 // pred_region
          %v464 = vld [vmem:[%s403] sm:$0xff]
          %v465 = vld [vmem:[#allocation11] sm:$0xff]
          %v466 = vld [vmem:[#allocation11 + $0x8] sm:$0xff]
          %v467 = vlaneseq
          %v468 = vshrl.u32 %v467, 7
          %v469 = vsub.s32 0, %v468
          %v470 = vrot.slane %v459, %v469
          %vm471 = vcmask 130048
          %v473 = vsel %vm471, %v464, 0
          %475 = vmatprep.subr.mxu0 0.0
          %476 = vmatpush1.msra.mxu0 %v465
          %477 = vmatprep.subr.mxu0 0.0
          %478 = vmatpush1.msra.mxu0 %v466
          %479 = vmatprep.subr.mxu0 0.0
          %480 = vmatpush1.msra.mxu0 0.0
          %481 = vmatprep.subr.mxu0 0.0
          %482 = vmatpush1.msra.mxu0 0.0
          %483 = vmatprep.subr.mxu0 0.0
          %484 = vmatpush1.msra.mxu0 0.0
          %485 = vmatprep.subr.mxu0 0.0
          %486 = vmatpush1.msra.mxu0 0.0
          %487 = vmatprep.subr.mxu0 0.0
          %488 = vmatpush1.msra.mxu0 0.0
          %489 = vmatprep.subr.mxu0 0.0
          %490 = vmatpush1.msra.mxu0 0.0
          %491 = vmatprep.subr.mxu0 0.0
          %492 = vmatpush1.msra.mxu0 0.0
          %493 = vmatprep.subr.mxu0 0.0
          %494 = vmatpush1.msra.mxu0 0.0
          %495 = vmatprep.subr.mxu0 0.0
          %496 = vmatpush1.msra.mxu0 0.0
          %497 = vmatprep.subr.mxu0 0.0
          %498 = vmatpush1.msra.mxu0 0.0
          %499 = vmatprep.subr.mxu0 0.0
          %500 = vmatpush1.msra.mxu0 0.0
          %501 = vmatprep.subr.mxu0 0.0
          %502 = vmatpush1.msra.mxu0 0.0
          %503 = vmatprep.subr.mxu0 0.0
          %504 = vmatpush1.msra.mxu0 0.0
          %505 = vmatprep.subr.mxu0 0.0
          %506 = vmatpush1.msra.mxu0 0.0
          %507 = vmatprep.subr.mxu0 0.0
          %508 = vmatpush1.msra.mxu0 0.0
          %509 = vmatprep.subr.mxu0 0.0
          %510 = vmatpush1.msra.mxu0 0.0
          %511 = vmatprep.subr.mxu0 0.0
          %512 = vmatpush1.msra.mxu0 0.0
          %513 = vmatprep.subr.mxu0 0.0
          %514 = vmatpush1.msra.mxu0 0.0
          %515 = vmatprep.subr.mxu0 0.0
          %516 = vmatpush1.msra.mxu0 0.0
          %517 = vmatprep.subr.mxu0 0.0
          %518 = vmatpush1.msra.mxu0 0.0
          %519 = vmatprep.subr.mxu0 0.0
          %520 = vmatpush1.msra.mxu0 0.0
          %521 = vmatprep.subr.mxu0 0.0
          %522 = vmatpush1.msra.mxu0 0.0
          %523 = vmatprep.subr.mxu0 0.0
          %524 = vmatpush1.msra.mxu0 0.0
          %525 = vmatprep.subr.mxu0 0.0
          %526 = vmatpush1.msra.mxu0 0.0
          %527 = vmatprep.subr.mxu0 0.0
          %528 = vmatpush1.msra.mxu0 0.0
          %529 = vmatprep.subr.mxu0 0.0
          %530 = vmatpush1.msra.mxu0 0.0
          %531 = vmatprep.subr.mxu0 0.0
          %532 = vmatpush1.msra.mxu0 0.0
          %533 = vmatprep.subr.mxu0 0.0
          %534 = vmatpush1.msra.mxu0 0.0
          %535 = vmatprep.subr.mxu0 0.0
          %536 = vmatpush1.msra.mxu0 0.0
          %537 = vmatprep.subr.mxu0 0.0
          %538 = vmatpush1.msra.mxu0 0.0
          %539 = vmatprep.mubr.f32.mxu0 0.0
          %540 = vmatmul.mubr.f32.gmra.mrb[0].mxu0 %v473
          %v541 = vpop.f32.mrb[0].mxu0
          %v542 = vadd.f32 %v470, %v541
          %v543 = vpop.f32.mrb[0].mxu0
          %544 = vdwg.mxu0
          %vm545 = vcmp.gt.f32.partialorder %v542, 0.0
          %v546 = vmul.f32 %v542, 0.01
          %v547 = vsel %vm545, %v542, %v546
          %v548 = vld [vmem:[#allocation13] sm:$0xff]
          %v549 = vld [vmem:[#allocation13 + $0x8] sm:$0xff]
          %v550 = vld [vmem:[#allocation13 + $0x10] sm:$0xff]
          %v551 = vld [vmem:[#allocation13 + $0x18] sm:$0xff]
          %v552 = vlaneseq
          %v553 = vshrl.u32 %v552, 7
          %v554 = vsub.s32 1, %v553
          %v555 = vrot.slane %v459, %v554
          %vm556 = vcmask 261120
          %v558 = vsel %vm556, %v547, 0
          %560 = vmatprep.subr.mxu0 0.0
          %561 = vmatpush1.msra.mxu0 %v548
          %562 = vmatprep.subr.mxu0 0.0
          %563 = vmatpush1.msra.mxu0 %v549
          %564 = vmatprep.subr.mxu0 0.0
          %565 = vmatpush1.msra.mxu0 %v550
          %566 = vmatprep.subr.mxu0 0.0
          %567 = vmatpush1.msra.mxu0 %v551
          %568 = vmatprep.subr.mxu0 0.0
          %569 = vmatpush1.msra.mxu0 0.0
          %570 = vmatprep.subr.mxu0 0.0
          %571 = vmatpush1.msra.mxu0 0.0
          %572 = vmatprep.subr.mxu0 0.0
          %573 = vmatpush1.msra.mxu0 0.0
          %574 = vmatprep.subr.mxu0 0.0
          %575 = vmatpush1.msra.mxu0 0.0
          %576 = vmatprep.subr.mxu0 0.0
          %577 = vmatpush1.msra.mxu0 0.0
          %578 = vmatprep.subr.mxu0 0.0
          %579 = vmatpush1.msra.mxu0 0.0
          %580 = vmatprep.subr.mxu0 0.0
          %581 = vmatpush1.msra.mxu0 0.0
          %582 = vmatprep.subr.mxu0 0.0
          %583 = vmatpush1.msra.mxu0 0.0
          %584 = vmatprep.subr.mxu0 0.0
          %585 = vmatpush1.msra.mxu0 0.0
          %586 = vmatprep.subr.mxu0 0.0
          %587 = vmatpush1.msra.mxu0 0.0
          %588 = vmatprep.subr.mxu0 0.0
          %589 = vmatpush1.msra.mxu0 0.0
          %590 = vmatprep.subr.mxu0 0.0
          %591 = vmatpush1.msra.mxu0 0.0
          %592 = vmatprep.subr.mxu0 0.0
          %593 = vmatpush1.msra.mxu0 0.0
          %594 = vmatprep.subr.mxu0 0.0
          %595 = vmatpush1.msra.mxu0 0.0
          %596 = vmatprep.subr.mxu0 0.0
          %597 = vmatpush1.msra.mxu0 0.0
          %598 = vmatprep.subr.mxu0 0.0
          %599 = vmatpush1.msra.mxu0 0.0
          %600 = vmatprep.subr.mxu0 0.0
          %601 = vmatpush1.msra.mxu0 0.0
          %602 = vmatprep.subr.mxu0 0.0
          %603 = vmatpush1.msra.mxu0 0.0
          %604 = vmatprep.subr.mxu0 0.0
          %605 = vmatpush1.msra.mxu0 0.0
          %606 = vmatprep.subr.mxu0 0.0
          %607 = vmatpush1.msra.mxu0 0.0
          %608 = vmatprep.subr.mxu0 0.0
          %609 = vmatpush1.msra.mxu0 0.0
          %610 = vmatprep.subr.mxu0 0.0
          %611 = vmatpush1.msra.mxu0 0.0
          %612 = vmatprep.subr.mxu0 0.0
          %613 = vmatpush1.msra.mxu0 0.0
          %614 = vmatprep.subr.mxu0 0.0
          %615 = vmatpush1.msra.mxu0 0.0
          %616 = vmatprep.subr.mxu0 0.0
          %617 = vmatpush1.msra.mxu0 0.0
          %618 = vmatprep.subr.mxu0 0.0
          %619 = vmatpush1.msra.mxu0 0.0
          %620 = vmatprep.subr.mxu0 0.0
          %621 = vmatpush1.msra.mxu0 0.0
          %622 = vmatprep.subr.mxu0 0.0
          %623 = vmatpush1.msra.mxu0 0.0
          %624 = vmatprep.mubr.f32.mxu0 0.0
          %625 = vmatmul.mubr.f32.gmra.mrb[0].mxu0 %v558
          %v626 = vpop.f32.mrb[0].mxu0
          %v627 = vadd.f32 %v555, %v626
          %v628 = vpop.f32.mrb[0].mxu0
          %629 = vdwg.mxu0
          %vm630 = vcmp.gt.f32.partialorder %v627, 0.0
          %v631 = vmul.f32 %v627, 0.01
          %v632 = vsel %vm630, %v627, %v631
          %v633 = vsel %vm556, %v632, 0.0
          %634 = vadd.xlane.f32.xlu0 %v633
          %v635 = vpop.xlane.xlu0 %634
          %v636 = vrcp.pop 32.0
          %v637 = vmul.f32 %v635, %v636
          %v638 = vsub.f32 %v632, %v637
          %v639 = vmul.f32 %v638, %v638
          %v640 = vsel %vm556, %v639, 0.0
          %641 = vadd.xlane.f32.xlu0 %v640
          %v642 = vpop.xlane.xlu0 %641
          %v643 = vmul.f32 %v642, %v636
          %v644 = vadd.f32 %v643, 1e-05
          %v645 = vrsqrt.pop %v644
          %v646 = vmul.f32 %v638, %v645
          %v647 = vlaneseq
          %v648 = vshrl.u32 %v647, 7
          %v649 = vsub.s32 2, %v648
          %v650 = vrot.slane %v459, %v649
          %v651 = vmul.f32 %v646, %v650
          %v652 = vlaneseq
          %v653 = vshrl.u32 %v652, 7
          %v654 = vsub.s32 3, %v653
          %v655 = vrot.slane %v459, %v654
          %v656 = vadd.f32 %v651, %v655
          %v657 = vpack.c.bf16 %v656, %v656
          %v658 = vld [vmem:[%s5] sm:$0xf]
          %v659 = vld [vmem:[%s5 + $0x4] sm:$0xf]
          %v660 = vld [vmem:[%s5 + $0x8] sm:$0xf]
          %v661 = vld [vmem:[%s5 + $0xc] sm:$0xf]
          %v666 = vunpack.c.l.b16 %v658
          %v667 = vunpack.c.l.b16 %v659
          %v668 = vunpack.c.l.b16 %v660
          %v669 = vunpack.c.l.b16 %v661
          %v670 = vpack.c.b16 %v667, %v666
          %v671 = vpack.c.b16 %v669, %v668
          %v675 = vsel %vm556, %v657, 0
          %677 = vmatprep.subr.bf16.mxu0 0
          %678 = vmatpush1.bf16.msra.mxu0 %v670
          %679 = vmatprep.subr.bf16.mxu0 0
          %680 = vmatpush1.bf16.msra.mxu0 %v671
          %681 = vmatprep.subr.bf16.mxu0 0
          %682 = vmatpush1.bf16.msra.mxu0 0
          %683 = vmatprep.subr.bf16.mxu0 0
          %684 = vmatpush1.bf16.msra.mxu0 0
          %685 = vmatprep.subr.bf16.mxu0 0
          %686 = vmatpush1.bf16.msra.mxu0 0
          %687 = vmatprep.subr.bf16.mxu0 0
          %688 = vmatpush1.bf16.msra.mxu0 0
          %689 = vmatprep.subr.bf16.mxu0 0
          %690 = vmatpush1.bf16.msra.mxu0 0
          %691 = vmatprep.subr.bf16.mxu0 0
          %692 = vmatpush1.bf16.msra.mxu0 0
          %693 = vmatprep.subr.bf16.mxu0 0
          %694 = vmatpush1.bf16.msra.mxu0 0
          %695 = vmatprep.subr.bf16.mxu0 0
          %696 = vmatpush1.bf16.msra.mxu0 0
          %697 = vmatprep.subr.bf16.mxu0 0
          %698 = vmatpush1.bf16.msra.mxu0 0
          %699 = vmatprep.subr.bf16.mxu0 0
          %700 = vmatpush1.bf16.msra.mxu0 0
          %701 = vmatprep.subr.bf16.mxu0 0
          %702 = vmatpush1.bf16.msra.mxu0 0
          %703 = vmatprep.subr.bf16.mxu0 0
          %704 = vmatpush1.bf16.msra.mxu0 0
          %705 = vmatprep.subr.bf16.mxu0 0
          %706 = vmatpush1.bf16.msra.mxu0 0
          %707 = vmatprep.subr.bf16.mxu0 0
          %708 = vmatpush1.bf16.msra.mxu0 0
          %709 = vmatprep.mubr.bf16.mxu0 0
          %710 = vmatmul.mubr.bf16.gmra.mrb[0].mxu0 %v675
          %v711 = vpop.f32.mrb[0].mxu0
          %v712 = vadd.f32 0.0, %v711
          %v713 = vpop.f32.mrb[0].mxu0
          %v714 = vpop.f32.mrb[0].mxu0
          %v715 = vpop.f32.mrb[0].mxu0
          %716 = vdwg.mxu0
          %v717 = vtanh.pop %v712
          %v718 = vlaneseq
          %v719 = vshrl.u32 %v718, 7
          %v720 = vsub.s32 4, %v719
          %v721 = vrot.slane %v459, %v720
          %v722 = vmul.f32 %v717, %v721
          %v723 = vsel %vm556, %v722, 0.0
          %724 = vadd.xlane.f32.xlu0 %v723
          %v725 = vpop.xlane.xlu0 %724
          %vm726 = vcmask 7168
          %727 = vst.msk [vmem:[#allocation2] sm:$0xff] %vm726, %v725
          %728 = vst.msk [vmem:[#allocation3] sm:$0xff] %vm726, 1.0
          %729 = vst.msk [vmem:[#allocation4] sm:$0xff] %vm556, %v656
        $region76: #{tpu_custom_call.1} parent=47 // pred_fallthru
          _
        %v730 = vld [vmem:[%s385] sm:$0xf]
        %v731 = vld [vmem:[%s385 + $0x4] sm:$0xf]
        %v732 = vld [vmem:[%s385 + $0x8] sm:$0xf]
        %v733 = vld [vmem:[%s385 + $0xc] sm:$0xf]
        %v734 = vld [vmem:[%s385 + $0x10] sm:$0xf]
        %v735 = vld [vmem:[%s385 + $0x14] sm:$0xf]
        %v736 = vld [vmem:[%s385 + $0x18] sm:$0xf]
        %v737 = vld [vmem:[%s385 + $0x1c] sm:$0xf]
        %v738 = vld [vmem:[%s385 + $0x20] sm:$0xf]
        %v739 = vld [vmem:[%s385 + $0x24] sm:$0xf]
        %v740 = vld [vmem:[%s385 + $0x28] sm:$0xf]
        %v741 = vld [vmem:[%s385 + $0x2c] sm:$0xf]
        %v742 = vld [vmem:[%s385 + $0x30] sm:$0xf]
        %v743 = vld [vmem:[%s385 + $0x34] sm:$0xf]
        %v744 = vld [vmem:[%s385 + $0x38] sm:$0xf]
        %v745 = vld [vmem:[%s385 + $0x3c] sm:$0xf]
        %v746 = vld [vmem:[%s5] sm:$0xf]
        %v747 = vld [vmem:[%s5 + $0x4] sm:$0xf]
        %v748 = vld [vmem:[%s5 + $0x8] sm:$0xf]
        %v749 = vld [vmem:[%s5 + $0xc] sm:$0xf]
        %v766 = vunpack.c.l.b16 %v730
        %v767 = vunpack.c.l.b16 %v731
        %v768 = vunpack.c.l.b16 %v732
        %v769 = vunpack.c.l.b16 %v733
        %v770 = vunpack.c.l.b16 %v734
        %v771 = vunpack.c.l.b16 %v735
        %v772 = vunpack.c.l.b16 %v736
        %v773 = vunpack.c.l.b16 %v737
        %v774 = vunpack.c.l.b16 %v738
        %v775 = vunpack.c.l.b16 %v739
        %v776 = vunpack.c.l.b16 %v740
        %v777 = vunpack.c.l.b16 %v741
        %v778 = vunpack.c.l.b16 %v742
        %v779 = vunpack.c.l.b16 %v743
        %v780 = vunpack.c.l.b16 %v744
        %v781 = vunpack.c.l.b16 %v745
        %v782 = vpack.c.b16 %v767, %v766
        %v783 = vpack.c.b16 %v769, %v768
        %v784 = vpack.c.b16 %v771, %v770
        %v785 = vpack.c.b16 %v773, %v772
        %v786 = vpack.c.b16 %v775, %v774
        %v787 = vpack.c.b16 %v777, %v776
        %v788 = vpack.c.b16 %v779, %v778
        %v789 = vpack.c.b16 %v781, %v780
        %v794 = vunpack.c.l.b16 %v746
        %v795 = vunpack.c.l.b16 %v747
        %v796 = vunpack.c.l.b16 %v748
        %v797 = vunpack.c.l.b16 %v749
        %v798 = vpack.c.b16 %v795, %v794
        %v799 = vpack.c.b16 %v797, %v796
        %vm802 = vcmask 261120
        %v804 = vsel %vm802, %v782, 0
        %v807 = vsel %vm802, %v783, 0
        %v810 = vsel %vm802, %v784, 0
        %v813 = vsel %vm802, %v785, 0
        %v816 = vsel %vm802, %v786, 0
        %v819 = vsel %vm802, %v787, 0
        %v822 = vsel %vm802, %v788, 0
        %v825 = vsel %vm802, %v789, 0
        %827 = vmatprep.subr.bf16.mxu0 0
        %828 = vmatpush1.bf16.msra.mxu0 %v798
        %829 = vmatprep.subr.bf16.mxu0 0
        %830 = vmatpush1.bf16.msra.mxu0 %v799
        %831 = vmatprep.subr.bf16.mxu0 0
        %832 = vmatpush1.bf16.msra.mxu0 0
        %833 = vmatprep.subr.bf16.mxu0 0
        %834 = vmatpush1.bf16.msra.mxu0 0
        %835 = vmatprep.subr.bf16.mxu0 0
        %836 = vmatpush1.bf16.msra.mxu0 0
        %837 = vmatprep.subr.bf16.mxu0 0
        %838 = vmatpush1.bf16.msra.mxu0 0
        %839 = vmatprep.subr.bf16.mxu0 0
        %840 = vmatpush1.bf16.msra.mxu0 0
        %841 = vmatprep.subr.bf16.mxu0 0
        %842 = vmatpush1.bf16.msra.mxu0 0
        %843 = vmatprep.subr.bf16.mxu0 0
        %844 = vmatpush1.bf16.msra.mxu0 0
        %845 = vmatprep.subr.bf16.mxu0 0
        %846 = vmatpush1.bf16.msra.mxu0 0
        %847 = vmatprep.subr.bf16.mxu0 0
        %848 = vmatpush1.bf16.msra.mxu0 0
        %849 = vmatprep.subr.bf16.mxu0 0
        %850 = vmatpush1.bf16.msra.mxu0 0
        %851 = vmatprep.subr.bf16.mxu0 0
        %852 = vmatpush1.bf16.msra.mxu0 0
        %853 = vmatprep.subr.bf16.mxu0 0
        %854 = vmatpush1.bf16.msra.mxu0 0
        %855 = vmatprep.subr.bf16.mxu0 0
        %856 = vmatpush1.bf16.msra.mxu0 0
        %857 = vmatprep.subr.bf16.mxu0 0
        %858 = vmatpush1.bf16.msra.mxu0 0
        %859 = vmatprep.mubr.bf16.mxu0 0
        %860 = vmatmul.mubr.bf16.gmra.mrb[0].mxu0 %v804
        %v861 = vpop.f32.mrb[0].mxu0
        %v862 = vadd.f32 0.0, %v861
        %v863 = vpop.f32.mrb[0].mxu0
        %v864 = vpop.f32.mrb[0].mxu0
        %v865 = vadd.f32 0.0, %v864
        %v866 = vpop.f32.mrb[0].mxu0
        %867 = vmatprep.mubr.bf16.mxu0 0
        %868 = vmatmul.mubr.bf16.gmra.mrb[0].mxu0 %v807
        %v869 = vpop.f32.mrb[0].mxu0
        %v870 = vadd.f32 0.0, %v869
        %v871 = vpop.f32.mrb[0].mxu0
        %v872 = vpop.f32.mrb[0].mxu0
        %v873 = vadd.f32 0.0, %v872
        %v874 = vpop.f32.mrb[0].mxu0
        %875 = vmatprep.mubr.bf16.mxu0 0
        %876 = vmatmul.mubr.bf16.gmra.mrb[0].mxu0 %v810
        %v877 = vpop.f32.mrb[0].mxu0
        %v878 = vadd.f32 0.0, %v877
        %v879 = vpop.f32.mrb[0].mxu0
        %v880 = vpop.f32.mrb[0].mxu0
        %v881 = vadd.f32 0.0, %v880
        %v882 = vpop.f32.mrb[0].mxu0
        %883 = vmatprep.mubr.bf16.mxu0 0
        %884 = vmatmul.mubr.bf16.gmra.mrb[0].mxu0 %v813
        %v885 = vpop.f32.mrb[0].mxu0
        %v886 = vadd.f32 0.0, %v885
        %v887 = vpop.f32.mrb[0].mxu0
        %v888 = vpop.f32.mrb[0].mxu0
        %v889 = vadd.f32 0.0, %v888
        %v890 = vpop.f32.mrb[0].mxu0
        %891 = vmatprep.mubr.bf16.mxu0 0
        %892 = vmatmul.mubr.bf16.gmra.mrb[0].mxu0 %v816
        %v893 = vpop.f32.mrb[0].mxu0
        %v894 = vadd.f32 0.0, %v893
        %v895 = vpop.f32.mrb[0].mxu0
        %v896 = vpop.f32.mrb[0].mxu0
        %v897 = vadd.f32 0.0, %v896
        %v898 = vpop.f32.mrb[0].mxu0
        %899 = vmatprep.mubr.bf16.mxu0 0
        %900 = vmatmul.mubr.bf16.gmra.mrb[0].mxu0 %v819
        %v901 = vpop.f32.mrb[0].mxu0
        %v902 = vadd.f32 0.0, %v901
        %v903 = vpop.f32.mrb[0].mxu0
        %v904 = vpop.f32.mrb[0].mxu0
        %v905 = vadd.f32 0.0, %v904
        %v906 = vpop.f32.mrb[0].mxu0
        %907 = vmatprep.mubr.bf16.mxu0 0
        %908 = vmatmul.mubr.bf16.gmra.mrb[0].mxu0 %v822
        %v909 = vpop.f32.mrb[0].mxu0
        %v910 = vadd.f32 0.0, %v909
        %v911 = vpop.f32.mrb[0].mxu0
        %v912 = vpop.f32.mrb[0].mxu0
        %v913 = vadd.f32 0.0, %v912
        %v914 = vpop.f32.mrb[0].mxu0
        %915 = vmatprep.mubr.bf16.mxu0 0
        %916 = vmatmul.mubr.bf16.gmra.mrb[0].mxu0 %v825
        %v917 = vpop.f32.mrb[0].mxu0
        %v918 = vadd.f32 0.0, %v917
        %v919 = vpop.f32.mrb[0].mxu0
        %v920 = vpop.f32.mrb[0].mxu0
        %v921 = vadd.f32 0.0, %v920
        %v922 = vpop.f32.mrb[0].mxu0
        %923 = vdwg.mxu0
        %v924 = vtanh.pop %v862
        %v925 = vtanh.pop %v865
        %v926 = vtanh.pop %v870
        %v927 = vtanh.pop %v873
        %v928 = vtanh.pop %v878
        %v929 = vtanh.pop %v881
        %v930 = vtanh.pop %v886
        %v931 = vtanh.pop %v889
        %v932 = vtanh.pop %v894
        %v933 = vtanh.pop %v897
        %v934 = vtanh.pop %v902
        %v935 = vtanh.pop %v905
        %v936 = vtanh.pop %v910
        %v937 = vtanh.pop %v913
        %v938 = vtanh.pop %v918
        %v939 = vtanh.pop %v921
        %v940 = vlaneseq
        %v941 = vshrl.u32 %v940, 7
        %v942 = vsub.s32 4, %v941
        %v943 = vrot.slane %v459, %v942
        %v944 = vmul.f32 %v924, %v943
        %v945 = vmul.f32 %v925, %v943
        %v946 = vmul.f32 %v926, %v943
        %v947 = vmul.f32 %v927, %v943
        %v948 = vmul.f32 %v928, %v943
        %v949 = vmul.f32 %v929, %v943
        %v950 = vmul.f32 %v930, %v943
        %v951 = vmul.f32 %v931, %v943
        %v952 = vmul.f32 %v932, %v943
        %v953 = vmul.f32 %v933, %v943
        %v954 = vmul.f32 %v934, %v943
        %v955 = vmul.f32 %v935, %v943
        %v956 = vmul.f32 %v936, %v943
        %v957 = vmul.f32 %v937, %v943
        %v958 = vmul.f32 %v938, %v943
        %v959 = vmul.f32 %v939, %v943
        %v960 = vsel %vm802, %v944, 0.0
        %961 = vadd.xlane.f32.xlu0 %v960
        %v962 = vpop.xlane.xlu0 %961
        %v963 = vsel %vm802, %v945, 0.0
        %964 = vadd.xlane.f32.xlu0 %v963
        %v965 = vpop.xlane.xlu0 %964
        %v966 = vsel %vm802, %v946, 0.0
        %967 = vadd.xlane.f32.xlu0 %v966
        %v968 = vpop.xlane.xlu0 %967
        %v969 = vsel %vm802, %v947, 0.0
        %970 = vadd.xlane.f32.xlu0 %v969
        %v971 = vpop.xlane.xlu0 %970
        %v972 = vsel %vm802, %v948, 0.0
        %973 = vadd.xlane.f32.xlu0 %v972
        %v974 = vpop.xlane.xlu0 %973
        %v975 = vsel %vm802, %v949, 0.0
        %976 = vadd.xlane.f32.xlu0 %v975
        %v977 = vpop.xlane.xlu0 %976
        %v978 = vsel %vm802, %v950, 0.0
        %979 = vadd.xlane.f32.xlu0 %v978
        %v980 = vpop.xlane.xlu0 %979
        %v981 = vsel %vm802, %v951, 0.0
        %982 = vadd.xlane.f32.xlu0 %v981
        %v983 = vpop.xlane.xlu0 %982
        %v984 = vsel %vm802, %v952, 0.0
        %985 = vadd.xlane.f32.xlu0 %v984
        %v986 = vpop.xlane.xlu0 %985
        %v987 = vsel %vm802, %v953, 0.0
        %988 = vadd.xlane.f32.xlu0 %v987
        %v989 = vpop.xlane.xlu0 %988
        %v990 = vsel %vm802, %v954, 0.0
        %991 = vadd.xlane.f32.xlu0 %v990
        %v992 = vpop.xlane.xlu0 %991
        %v993 = vsel %vm802, %v955, 0.0
        %994 = vadd.xlane.f32.xlu0 %v993
        %v995 = vpop.xlane.xlu0 %994
        %v996 = vsel %vm802, %v956, 0.0
        %997 = vadd.xlane.f32.xlu0 %v996
        %v998 = vpop.xlane.xlu0 %997
        %v999 = vsel %vm802, %v957, 0.0
        %1000 = vadd.xlane.f32.xlu0 %v999
        %v1001 = vpop.xlane.xlu0 %1000
        %v1002 = vsel %vm802, %v958, 0.0
        %1003 = vadd.xlane.f32.xlu0 %v1002
        %v1004 = vpop.xlane.xlu0 %1003
        %v1005 = vsel %vm802, %v959, 0.0
        %1006 = vadd.xlane.f32.xlu0 %v1005
        %v1007 = vpop.xlane.xlu0 %1006
        %v1008 = vld [vmem:[%s394] sm:$0xff]
        %v1010 = vlaneseq
        %v1011 = vshrl.u32 %v1010, 7
        %v1012 = vsub.s32 0, %v1011
        %v1013 = vrot.slane %v1008, %v1012
        %1015 = vbcast.lane.b32.xlu0 %v1013, 256
        %v1016 = vpop.permute.xlu0 %1015
        %s1018 = sor.u32 256, 8
        %1019 = vbcast.lane.b32.xlu0 %v1013, %s1018
        %v1020 = vpop.permute.xlu0 %1019
        %v1021 = vlaneseq
        %v1022 = vshrl.u32 %v1021, 7
        %v1023 = vsub.s32 1, %v1022
        %v1024 = vrot.slane %v1008, %v1023
        %1026 = vbcast.lane.b32.xlu0 %v1024, 256
        %v1027 = vpop.permute.xlu0 %1026
        %s1029 = sor.u32 256, 8
        %1030 = vbcast.lane.b32.xlu0 %v1024, %s1029
        %v1031 = vpop.permute.xlu0 %1030
        %v1032 = vlaneseq
        %v1033 = vshrl.u32 %v1032, 7
        %v1034 = vsub.s32 2, %v1033
        %v1035 = vrot.slane %v1008, %v1034
        %1037 = vbcast.lane.b32.xlu0 %v1035, 256
        %v1038 = vpop.permute.xlu0 %1037
        %s1040 = sor.u32 256, 8
        %1041 = vbcast.lane.b32.xlu0 %v1035, %s1040
        %v1042 = vpop.permute.xlu0 %1041
        %v1043 = vlaneseq
        %v1044 = vshrl.u32 %v1043, 7
        %v1045 = vsub.s32 3, %v1044
        %v1046 = vrot.slane %v1008, %v1045
        %1048 = vbcast.lane.b32.xlu0 %v1046, 256
        %v1049 = vpop.permute.xlu0 %1048
        %s1051 = sor.u32 256, 8
        %1052 = vbcast.lane.b32.xlu0 %v1046, %s1051
        %v1053 = vpop.permute.xlu0 %1052
        %v1054 = vlaneseq
        %v1055 = vshrl.u32 %v1054, 7
        %v1056 = vsub.s32 4, %v1055
        %v1057 = vrot.slane %v1008, %v1056
        %1059 = vbcast.lane.b32.xlu0 %v1057, 256
        %v1060 = vpop.permute.xlu0 %1059
        %s1062 = sor.u32 256, 8
        %1063 = vbcast.lane.b32.xlu0 %v1057, %s1062
        %v1064 = vpop.permute.xlu0 %1063
        %v1065 = vlaneseq
        %v1066 = vshrl.u32 %v1065, 7
        %v1067 = vsub.s32 5, %v1066
        %v1068 = vrot.slane %v1008, %v1067
        %1070 = vbcast.lane.b32.xlu0 %v1068, 256
        %v1071 = vpop.permute.xlu0 %1070
        %s1073 = sor.u32 256, 8
        %1074 = vbcast.lane.b32.xlu0 %v1068, %s1073
        %v1075 = vpop.permute.xlu0 %1074
        %v1076 = vlaneseq
        %v1077 = vshrl.u32 %v1076, 7
        %v1078 = vsub.s32 6, %v1077
        %v1079 = vrot.slane %v1008, %v1078
        %1081 = vbcast.lane.b32.xlu0 %v1079, 256
        %v1082 = vpop.permute.xlu0 %1081
        %s1084 = sor.u32 256, 8
        %1085 = vbcast.lane.b32.xlu0 %v1079, %s1084
        %v1086 = vpop.permute.xlu0 %1085
        %v1087 = vlaneseq
        %v1088 = vshrl.u32 %v1087, 7
        %v1089 = vsub.s32 7, %v1088
        %v1090 = vrot.slane %v1008, %v1089
        %1092 = vbcast.lane.b32.xlu0 %v1090, 256
        %v1093 = vpop.permute.xlu0 %1092
        %s1095 = sor.u32 256, 8
        %1096 = vbcast.lane.b32.xlu0 %v1090, %s1095
        %v1097 = vpop.permute.xlu0 %1096
        %v1114 = vadd.f32 %v962, %v1016
        %v1115 = vadd.f32 %v965, %v1020
        %v1116 = vadd.f32 %v968, %v1027
        %v1117 = vadd.f32 %v971, %v1031
        %v1118 = vadd.f32 %v974, %v1038
        %v1119 = vadd.f32 %v977, %v1042
        %v1120 = vadd.f32 %v980, %v1049
        %v1121 = vadd.f32 %v983, %v1053
        %v1122 = vadd.f32 %v986, %v1060
        %v1123 = vadd.f32 %v989, %v1064
        %v1124 = vadd.f32 %v992, %v1071
        %v1125 = vadd.f32 %v995, %v1075
        %v1126 = vadd.f32 %v998, %v1082
        %v1127 = vadd.f32 %v1001, %v1086
        %v1128 = vadd.f32 %v1004, %v1093
        %v1129 = vadd.f32 %v1007, %v1097
        %v1130 = vld [vmem:[#allocation2] sm:$0xff]
        %1147 = vset.pattern.permute.xlu0 0
        %1148 = vperm.xlu0 %1147, %v1114
        %v1149 = vpop.permute.xlu0 %1148
        %1150 = vset.pattern.permute.xlu0 0
        %1151 = vperm.xlu0 %1150, %v1115
        %v1152 = vpop.permute.xlu0 %1151
        %1153 = vset.pattern.permute.xlu0 0
        %1154 = vperm.xlu0 %1153, %v1116
        %v1155 = vpop.permute.xlu0 %1154
        %1156 = vset.pattern.permute.xlu0 0
        %1157 = vperm.xlu0 %1156, %v1117
        %v1158 = vpop.permute.xlu0 %1157
        %1159 = vset.pattern.permute.xlu0 0
        %1160 = vperm.xlu0 %1159, %v1118
        %v1161 = vpop.permute.xlu0 %1160
        %1162 = vset.pattern.permute.xlu0 0
        %1163 = vperm.xlu0 %1162, %v1119
        %v1164 = vpop.permute.xlu0 %1163
        %1165 = vset.pattern.permute.xlu0 0
        %1166 = vperm.xlu0 %1165, %v1120
        %v1167 = vpop.permute.xlu0 %1166
        %1168 = vset.pattern.permute.xlu0 0
        %1169 = vperm.xlu0 %1168, %v1121
        %v1170 = vpop.permute.xlu0 %1169
        %1171 = vset.pattern.permute.xlu0 0
        %1172 = vperm.xlu0 %1171, %v1122
        %v1173 = vpop.permute.xlu0 %1172
        %1174 = vset.pattern.permute.xlu0 0
        %1175 = vperm.xlu0 %1174, %v1123
        %v1176 = vpop.permute.xlu0 %1175
        %1177 = vset.pattern.permute.xlu0 0
        %1178 = vperm.xlu0 %1177, %v1124
        %v1179 = vpop.permute.xlu0 %1178
        %1180 = vset.pattern.permute.xlu0 0
        %1181 = vperm.xlu0 %1180, %v1125
        %v1182 = vpop.permute.xlu0 %1181
        %1183 = vset.pattern.permute.xlu0 0
        %1184 = vperm.xlu0 %1183, %v1126
        %v1185 = vpop.permute.xlu0 %1184
        %1186 = vset.pattern.permute.xlu0 0
        %1187 = vperm.xlu0 %1186, %v1127
        %v1188 = vpop.permute.xlu0 %1187
        %1189 = vset.pattern.permute.xlu0 0
        %1190 = vperm.xlu0 %1189, %v1128
        %v1191 = vpop.permute.xlu0 %1190
        %1192 = vset.pattern.permute.xlu0 0
        %1193 = vperm.xlu0 %1192, %v1129
        %v1194 = vpop.permute.xlu0 %1193
        %v1195 = vlaneseq
        %v1196 = vand.u32 %v1195, 127
        %v1197 = vlaneseq
        %v1198 = vshrl.u32 %v1197, 7
        %v1199 = vsub.s32 %v1196, %v1198
        %v1200 = vrot.slane %v1149, %v1199
        %v1201 = vadd.s32 %v1196, 4294967288
        %v1202 = vlaneseq
        %v1203 = vshrl.u32 %v1202, 7
        %v1204 = vsub.s32 %v1201, %v1203
        %v1205 = vrot.slane %v1152, %v1204
        %vm1206 = vcmask 130112
        %v1207 = vsel %vm1206, %v1205, %v1200
        %v1208 = vlaneseq
        %v1209 = vshrl.u32 %v1208, 7
        %v1210 = vsub.s32 %v1196, %v1209
        %v1211 = vrot.slane %v1155, %v1210
        %v1212 = vlaneseq
        %v1213 = vshrl.u32 %v1212, 7
        %v1214 = vsub.s32 %v1201, %v1213
        %v1215 = vrot.slane %v1158, %v1214
        %v1216 = vsel %vm1206, %v1215, %v1211
        %v1217 = vlaneseq
        %v1218 = vshrl.u32 %v1217, 7
        %v1219 = vsub.s32 %v1196, %v1218
        %v1220 = vrot.slane %v1161, %v1219
        %v1221 = vlaneseq
        %v1222 = vshrl.u32 %v1221, 7
        %v1223 = vsub.s32 %v1201, %v1222
        %v1224 = vrot.slane %v1164, %v1223
        %v1225 = vsel %vm1206, %v1224, %v1220
        %v1226 = vlaneseq
        %v1227 = vshrl.u32 %v1226, 7
        %v1228 = vsub.s32 %v1196, %v1227
        %v1229 = vrot.slane %v1167, %v1228
        %v1230 = vlaneseq
        %v1231 = vshrl.u32 %v1230, 7
        %v1232 = vsub.s32 %v1201, %v1231
        %v1233 = vrot.slane %v1170, %v1232
        %v1234 = vsel %vm1206, %v1233, %v1229
        %v1235 = vlaneseq
        %v1236 = vshrl.u32 %v1235, 7
        %v1237 = vsub.s32 %v1196, %v1236
        %v1238 = vrot.slane %v1173, %v1237
        %v1239 = vlaneseq
        %v1240 = vshrl.u32 %v1239, 7
        %v1241 = vsub.s32 %v1201, %v1240
        %v1242 = vrot.slane %v1176, %v1241
        %v1243 = vsel %vm1206, %v1242, %v1238
        %v1244 = vlaneseq
        %v1245 = vshrl.u32 %v1244, 7
        %v1246 = vsub.s32 %v1196, %v1245
        %v1247 = vrot.slane %v1179, %v1246
        %v1248 = vlaneseq
        %v1249 = vshrl.u32 %v1248, 7
        %v1250 = vsub.s32 %v1201, %v1249
        %v1251 = vrot.slane %v1182, %v1250
        %v1252 = vsel %vm1206, %v1251, %v1247
        %v1253 = vlaneseq
        %v1254 = vshrl.u32 %v1253, 7
        %v1255 = vsub.s32 %v1196, %v1254
        %v1256 = vrot.slane %v1185, %v1255
        %v1257 = vlaneseq
        %v1258 = vshrl.u32 %v1257, 7
        %v1259 = vsub.s32 %v1201, %v1258
        %v1260 = vrot.slane %v1188, %v1259
        %v1261 = vsel %vm1206, %v1260, %v1256
        %v1262 = vlaneseq
        %v1263 = vshrl.u32 %v1262, 7
        %v1264 = vsub.s32 %v1196, %v1263
        %v1265 = vrot.slane %v1191, %v1264
        %v1266 = vlaneseq
        %v1267 = vshrl.u32 %v1266, 7
        %v1268 = vsub.s32 %v1201, %v1267
        %v1269 = vrot.slane %v1194, %v1268
        %v1270 = vsel %vm1206, %v1269, %v1265
        %vm1271 = vcmask 1041409
        %v1272 = vsel %vm1271, %v1216, %v1207
        %vm1273 = vcmask 1042434
        %v1274 = vsel %vm1273, %v1225, %v1272
        %vm1275 = vcmask 1043459
        %v1276 = vsel %vm1275, %v1234, %v1274
        %vm1277 = vcmask 1044484
        %v1278 = vsel %vm1277, %v1243, %v1276
        %vm1279 = vcmask 1045509
        %v1280 = vsel %vm1279, %v1252, %v1278
        %vm1281 = vcmask 1046534
        %v1282 = vsel %vm1281, %v1261, %v1280
        %vm1283 = vcmask 1047559
        %v1284 = vsel %vm1283, %v1270, %v1282
        %vm1286 = vcmask 130048
        %v1287 = vsel %vm1286, %v1284, -inf
        %1288 = vmax.xlane.f32.xlu0 %v1287
        %v1289 = vpop.xlane.xlu0 %1288
        %v1290 = vmax.f32 %v1130, %v1289
        %v1291 = vsub.f32 %v1130, %v1290
        %v1292 = vmul.f32 %v1291, 1.442695
        %v1293 = vpow.pop %v1292
        %1295 = vset.pattern.permute.xlu0 0
        %1296 = vperm.xlu0 %1295, %v1290
        %v1297 = vpop.permute.xlu0 %1296
        %v1298 = vlaneseq
        %v1299 = vshrl.u32 %v1298, 7
        %v1300 = vsub.s32 0, %v1299
        %v1301 = vrot.slane %v1297, %v1300
        %v1302 = vlaneseq
        %v1303 = vshrl.u32 %v1302, 7
        %v1304 = vsub.s32 1, %v1303
        %v1305 = vrot.slane %v1297, %v1304
        %v1306 = vlaneseq
        %v1307 = vshrl.u32 %v1306, 7
        %v1308 = vsub.s32 2, %v1307
        %v1309 = vrot.slane %v1297, %v1308
        %v1310 = vlaneseq
        %v1311 = vshrl.u32 %v1310, 7
        %v1312 = vsub.s32 3, %v1311
        %v1313 = vrot.slane %v1297, %v1312
        %v1314 = vlaneseq
        %v1315 = vshrl.u32 %v1314, 7
        %v1316 = vsub.s32 4, %v1315
        %v1317 = vrot.slane %v1297, %v1316
        %v1318 = vlaneseq
        %v1319 = vshrl.u32 %v1318, 7
        %v1320 = vsub.s32 5, %v1319
        %v1321 = vrot.slane %v1297, %v1320
        %v1322 = vlaneseq
        %v1323 = vshrl.u32 %v1322, 7
        %v1324 = vsub.s32 6, %v1323
        %v1325 = vrot.slane %v1297, %v1324
        %v1326 = vlaneseq
        %v1327 = vshrl.u32 %v1326, 7
        %v1328 = vsub.s32 7, %v1327
        %v1329 = vrot.slane %v1297, %v1328
        %v1338 = vsub.f32 %v1114, %v1301
        %v1339 = vsub.f32 %v1115, %v1301
        %v1340 = vsub.f32 %v1116, %v1305
        %v1341 = vsub.f32 %v1117, %v1305
        %v1342 = vsub.f32 %v1118, %v1309
        %v1343 = vsub.f32 %v1119, %v1309
        %v1344 = vsub.f32 %v1120, %v1313
        %v1345 = vsub.f32 %v1121, %v1313
        %v1346 = vsub.f32 %v1122, %v1317
        %v1347 = vsub.f32 %v1123, %v1317
        %v1348 = vsub.f32 %v1124, %v1321
        %v1349 = vsub.f32 %v1125, %v1321
        %v1350 = vsub.f32 %v1126, %v1325
        %v1351 = vsub.f32 %v1127, %v1325
        %v1352 = vsub.f32 %v1128, %v1329
        %v1353 = vsub.f32 %v1129, %v1329
        %v1354 = vmul.f32 %v1338, 1.442695
        %v1355 = vpow.pop %v1354
        %v1356 = vmul.f32 %v1339, 1.442695
        %v1357 = vpow.pop %v1356
        %v1358 = vmul.f32 %v1340, 1.442695
        %v1359 = vpow.pop %v1358
        %v1360 = vmul.f32 %v1341, 1.442695
        %v1361 = vpow.pop %v1360
        %v1362 = vmul.f32 %v1342, 1.442695
        %v1363 = vpow.pop %v1362
        %v1364 = vmul.f32 %v1343, 1.442695
        %v1365 = vpow.pop %v1364
        %v1366 = vmul.f32 %v1344, 1.442695
        %v1367 = vpow.pop %v1366
        %v1368 = vmul.f32 %v1345, 1.442695
        %v1369 = vpow.pop %v1368
        %v1370 = vmul.f32 %v1346, 1.442695
        %v1371 = vpow.pop %v1370
        %v1372 = vmul.f32 %v1347, 1.442695
        %v1373 = vpow.pop %v1372
        %v1374 = vmul.f32 %v1348, 1.442695
        %v1375 = vpow.pop %v1374
        %v1376 = vmul.f32 %v1349, 1.442695
        %v1377 = vpow.pop %v1376
        %v1378 = vmul.f32 %v1350, 1.442695
        %v1379 = vpow.pop %v1378
        %v1380 = vmul.f32 %v1351, 1.442695
        %v1381 = vpow.pop %v1380
        %v1382 = vmul.f32 %v1352, 1.442695
        %v1383 = vpow.pop %v1382
        %v1384 = vmul.f32 %v1353, 1.442695
        %v1385 = vpow.pop %v1384
        %vm1386 = vcmask 7168
        %1387 = vst.msk [vmem:[#allocation2] sm:$0xff] %vm1386, %v1290
        %v1388 = vld [vmem:[#allocation3] sm:$0xff]
        %v1389 = vmul.f32 %v1293, %v1388
        %1406 = vset.pattern.permute.xlu0 0
        %1407 = vperm.xlu0 %1406, %v1355
        %v1408 = vpop.permute.xlu0 %1407
        %1409 = vset.pattern.permute.xlu0 0
        %1410 = vperm.xlu0 %1409, %v1357
        %v1411 = vpop.permute.xlu0 %1410
        %1412 = vset.pattern.permute.xlu0 0
        %1413 = vperm.xlu0 %1412, %v1359
        %v1414 = vpop.permute.xlu0 %1413
        %1415 = vset.pattern.permute.xlu0 0
        %1416 = vperm.xlu0 %1415, %v1361
        %v1417 = vpop.permute.xlu0 %1416
        %1418 = vset.pattern.permute.xlu0 0
        %1419 = vperm.xlu0 %1418, %v1363
        %v1420 = vpop.permute.xlu0 %1419
        %1421 = vset.pattern.permute.xlu0 0
        %1422 = vperm.xlu0 %1421, %v1365
        %v1423 = vpop.permute.xlu0 %1422
        %1424 = vset.pattern.permute.xlu0 0
        %1425 = vperm.xlu0 %1424, %v1367
        %v1426 = vpop.permute.xlu0 %1425
        %1427 = vset.pattern.permute.xlu0 0
        %1428 = vperm.xlu0 %1427, %v1369
        %v1429 = vpop.permute.xlu0 %1428
        %1430 = vset.pattern.permute.xlu0 0
        %1431 = vperm.xlu0 %1430, %v1371
        %v1432 = vpop.permute.xlu0 %1431
        %1433 = vset.pattern.permute.xlu0 0
        %1434 = vperm.xlu0 %1433, %v1373
        %v1435 = vpop.permute.xlu0 %1434
        %1436 = vset.pattern.permute.xlu0 0
        %1437 = vperm.xlu0 %1436, %v1375
        %v1438 = vpop.permute.xlu0 %1437
        %1439 = vset.pattern.permute.xlu0 0
        %1440 = vperm.xlu0 %1439, %v1377
        %v1441 = vpop.permute.xlu0 %1440
        %1442 = vset.pattern.permute.xlu0 0
        %1443 = vperm.xlu0 %1442, %v1379
        %v1444 = vpop.permute.xlu0 %1443
        %1445 = vset.pattern.permute.xlu0 0
        %1446 = vperm.xlu0 %1445, %v1381
        %v1447 = vpop.permute.xlu0 %1446
        %1448 = vset.pattern.permute.xlu0 0
        %1449 = vperm.xlu0 %1448, %v1383
        %v1450 = vpop.permute.xlu0 %1449
        %1451 = vset.pattern.permute.xlu0 0
        %1452 = vperm.xlu0 %1451, %v1385
        %v1453 = vpop.permute.xlu0 %1452
        %v1454 = vlaneseq
        %v1455 = vshrl.u32 %v1454, 7
        %v1456 = vsub.s32 %v1196, %v1455
        %v1457 = vrot.slane %v1408, %v1456
        %v1458 = vlaneseq
        %v1459 = vshrl.u32 %v1458, 7
        %v1460 = vsub.s32 %v1201, %v1459
        %v1461 = vrot.slane %v1411, %v1460
        %v1462 = vsel %vm1206, %v1461, %v1457
        %v1463 = vlaneseq
        %v1464 = vshrl.u32 %v1463, 7
        %v1465 = vsub.s32 %v1196, %v1464
        %v1466 = vrot.slane %v1414, %v1465
        %v1467 = vlaneseq
        %v1468 = vshrl.u32 %v1467, 7
        %v1469 = vsub.s32 %v1201, %v1468
        %v1470 = vrot.slane %v1417, %v1469
        %v1471 = vsel %vm1206, %v1470, %v1466
        %v1472 = vlaneseq
        %v1473 = vshrl.u32 %v1472, 7
        %v1474 = vsub.s32 %v1196, %v1473
        %v1475 = vrot.slane %v1420, %v1474
        %v1476 = vlaneseq
        %v1477 = vshrl.u32 %v1476, 7
        %v1478 = vsub.s32 %v1201, %v1477
        %v1479 = vrot.slane %v1423, %v1478
        %v1480 = vsel %vm1206, %v1479, %v1475
        %v1481 = vlaneseq
        %v1482 = vshrl.u32 %v1481, 7
        %v1483 = vsub.s32 %v1196, %v1482
        %v1484 = vrot.slane %v1426, %v1483
        %v1485 = vlaneseq
        %v1486 = vshrl.u32 %v1485, 7
        %v1487 = vsub.s32 %v1201, %v1486
        %v1488 = vrot.slane %v1429, %v1487
        %v1489 = vsel %vm1206, %v1488, %v1484
        %v1490 = vlaneseq
        %v1491 = vshrl.u32 %v1490, 7
        %v1492 = vsub.s32 %v1196, %v1491
        %v1493 = vrot.slane %v1432, %v1492
        %v1494 = vlaneseq
        %v1495 = vshrl.u32 %v1494, 7
        %v1496 = vsub.s32 %v1201, %v1495
        %v1497 = vrot.slane %v1435, %v1496
        %v1498 = vsel %vm1206, %v1497, %v1493
        %v1499 = vlaneseq
        %v1500 = vshrl.u32 %v1499, 7
        %v1501 = vsub.s32 %v1196, %v1500
        %v1502 = vrot.slane %v1438, %v1501
        %v1503 = vlaneseq
        %v1504 = vshrl.u32 %v1503, 7
        %v1505 = vsub.s32 %v1201, %v1504
        %v1506 = vrot.slane %v1441, %v1505
        %v1507 = vsel %vm1206, %v1506, %v1502
        %v1508 = vlaneseq
        %v1509 = vshrl.u32 %v1508, 7
        %v1510 = vsub.s32 %v1196, %v1509
        %v1511 = vrot.slane %v1444, %v1510
        %v1512 = vlaneseq
        %v1513 = vshrl.u32 %v1512, 7
        %v1514 = vsub.s32 %v1201, %v1513
        %v1515 = vrot.slane %v1447, %v1514
        %v1516 = vsel %vm1206, %v1515, %v1511
        %v1517 = vlaneseq
        %v1518 = vshrl.u32 %v1517, 7
        %v1519 = vsub.s32 %v1196, %v1518
        %v1520 = vrot.slane %v1450, %v1519
        %v1521 = vlaneseq
        %v1522 = vshrl.u32 %v1521, 7
        %v1523 = vsub.s32 %v1201, %v1522
        %v1524 = vrot.slane %v1453, %v1523
        %v1525 = vsel %vm1206, %v1524, %v1520
        %v1526 = vsel %vm1271, %v1471, %v1462
        %v1527 = vsel %vm1273, %v1480, %v1526
        %v1528 = vsel %vm1275, %v1489, %v1527
        %v1529 = vsel %vm1277, %v1498, %v1528
        %v1530 = vsel %vm1279, %v1507, %v1529
        %v1531 = vsel %vm1281, %v1516, %v1530
        %v1532 = vsel %vm1283, %v1525, %v1531
        %v1534 = vsel %vm1286, %v1532, 0.0
        %1535 = vadd.xlane.f32.xlu0 %v1534
        %v1536 = vpop.xlane.xlu0 %1535
        %v1537 = vadd.f32 %v1389, %v1536
        %1538 = vst.msk [vmem:[#allocation3] sm:$0xff] %vm1386, %v1537
        %v1539 = vld [vmem:[#allocation4] sm:$0xff]
        %1541 = vset.pattern.permute.xlu0 0
        %1542 = vperm.xlu0 %1541, %v1293
        %v1543 = vpop.permute.xlu0 %1542
        %v1545 = vmul.f32 %v1543, %v1539
        %v1546 = vunpack.c.l.bf16 %v730
        %v1547 = vunpack.c.l.bf16 %v731
        %v1548 = vunpack.c.l.bf16 %v732
        %v1549 = vunpack.c.l.bf16 %v733
        %v1550 = vunpack.c.l.bf16 %v734
        %v1551 = vunpack.c.l.bf16 %v735
        %v1552 = vunpack.c.l.bf16 %v736
        %v1553 = vunpack.c.l.bf16 %v737
        %v1554 = vunpack.c.l.bf16 %v738
        %v1555 = vunpack.c.l.bf16 %v739
        %v1556 = vunpack.c.l.bf16 %v740
        %v1557 = vunpack.c.l.bf16 %v741
        %v1558 = vunpack.c.l.bf16 %v742
        %v1559 = vunpack.c.l.bf16 %v743
        %v1560 = vunpack.c.l.bf16 %v744
        %v1561 = vunpack.c.l.bf16 %v745
        %v1578 = vmul.f32 %v1408, %v1546
        %v1579 = vmul.f32 %v1411, %v1547
        %v1580 = vmul.f32 %v1414, %v1548
        %v1581 = vmul.f32 %v1417, %v1549
        %v1582 = vmul.f32 %v1420, %v1550
        %v1583 = vmul.f32 %v1423, %v1551
        %v1584 = vmul.f32 %v1426, %v1552
        %v1585 = vmul.f32 %v1429, %v1553
        %v1586 = vmul.f32 %v1432, %v1554
        %v1587 = vmul.f32 %v1435, %v1555
        %v1588 = vmul.f32 %v1438, %v1556
        %v1589 = vmul.f32 %v1441, %v1557
        %v1590 = vmul.f32 %v1444, %v1558
        %v1591 = vmul.f32 %v1447, %v1559
        %v1592 = vmul.f32 %v1450, %v1560
        %v1593 = vmul.f32 %v1453, %v1561
        %v1594 = vsel %vm802, %v1578, 0.0
        %v1595 = vsel %vm802, %v1579, 0.0
        %v1596 = vadd.f32 %v1594, %v1595
        %v1597 = vrot.slane %v1596, 4
        %v1598 = vadd.f32 %v1596, %v1597
        %v1599 = vrot.slane %v1598, 2
        %v1600 = vadd.f32 %v1598, %v1599
        %v1601 = vrot.slane %v1600, 1
        %v1602 = vadd.f32 %v1600, %v1601
        %v1603 = vsel %vm802, %v1580, 0.0
        %v1604 = vsel %vm802, %v1581, 0.0
        %v1605 = vadd.f32 %v1603, %v1604
        %v1606 = vrot.slane %v1605, 4
        %v1607 = vadd.f32 %v1605, %v1606
        %v1608 = vrot.slane %v1607, 2
        %v1609 = vadd.f32 %v1607, %v1608
        %v1610 = vrot.slane %v1609, 1
        %v1611 = vadd.f32 %v1609, %v1610
        %v1612 = vsel %vm802, %v1582, 0.0
        %v1613 = vsel %vm802, %v1583, 0.0
        %v1614 = vadd.f32 %v1612, %v1613
        %v1615 = vrot.slane %v1614, 4
        %v1616 = vadd.f32 %v1614, %v1615
        %v1617 = vrot.slane %v1616, 2
        %v1618 = vadd.f32 %v1616, %v1617
        %v1619 = vrot.slane %v1618, 1
        %v1620 = vadd.f32 %v1618, %v1619
        %v1621 = vsel %vm802, %v1584, 0.0
        %v1622 = vsel %vm802, %v1585, 0.0
        %v1623 = vadd.f32 %v1621, %v1622
        %v1624 = vrot.slane %v1623, 4
        %v1625 = vadd.f32 %v1623, %v1624
        %v1626 = vrot.slane %v1625, 2
        %v1627 = vadd.f32 %v1625, %v1626
        %v1628 = vrot.slane %v1627, 1
        %v1629 = vadd.f32 %v1627, %v1628
        %v1630 = vsel %vm802, %v1586, 0.0
        %v1631 = vsel %vm802, %v1587, 0.0
        %v1632 = vadd.f32 %v1630, %v1631
        %v1633 = vrot.slane %v1632, 4
        %v1634 = vadd.f32 %v1632, %v1633
        %v1635 = vrot.slane %v1634, 2
        %v1636 = vadd.f32 %v1634, %v1635
        %v1637 = vrot.slane %v1636, 1
        %v1638 = vadd.f32 %v1636, %v1637
        %v1639 = vsel %vm802, %v1588, 0.0
        %v1640 = vsel %vm802, %v1589, 0.0
        %v1641 = vadd.f32 %v1639, %v1640
        %v1642 = vrot.slane %v1641, 4
        %v1643 = vadd.f32 %v1641, %v1642
        %v1644 = vrot.slane %v1643, 2
        %v1645 = vadd.f32 %v1643, %v1644
        %v1646 = vrot.slane %v1645, 1
        %v1647 = vadd.f32 %v1645, %v1646
        %v1648 = vsel %vm802, %v1590, 0.0
        %v1649 = vsel %vm802, %v1591, 0.0
        %v1650 = vadd.f32 %v1648, %v1649
        %v1651 = vrot.slane %v1650, 4
        %v1652 = vadd.f32 %v1650, %v1651
        %v1653 = vrot.slane %v1652, 2
        %v1654 = vadd.f32 %v1652, %v1653
        %v1655 = vrot.slane %v1654, 1
        %v1656 = vadd.f32 %v1654, %v1655
        %v1657 = vsel %vm802, %v1592, 0.0
        %v1658 = vsel %vm802, %v1593, 0.0
        %v1659 = vadd.f32 %v1657, %v1658
        %v1660 = vrot.slane %v1659, 4
        %v1661 = vadd.f32 %v1659, %v1660
        %v1662 = vrot.slane %v1661, 2
        %v1663 = vadd.f32 %v1661, %v1662
        %v1664 = vrot.slane %v1663, 1
        %v1665 = vadd.f32 %v1663, %v1664
        %v1674 = vsel %vm1271, %v1611, %v1602
        %v1675 = vsel %vm1273, %v1620, %v1674
        %v1676 = vsel %vm1275, %v1629, %v1675
        %v1677 = vsel %vm1277, %v1638, %v1676
        %v1678 = vsel %vm1279, %v1647, %v1677
        %v1679 = vsel %vm1281, %v1656, %v1678
        %v1680 = vsel %vm1283, %v1665, %v1679
        %v1682 = vadd.f32 %v1545, %v1680
        %1683 = vst.msk [vmem:[#allocation4] sm:$0xff] %vm802, %v1682
        %p1684 = scmp.eq.s32.totalorder %s34, 1
        // Predicated region
        $region77: #{tpu_custom_call.1} parent=47 // pred_check
          %p1685 = pneg %p1684
        $region78: #{tpu_custom_call.1} parent=47 // pred_check_branch
          %1687 = sbr.rel (%p1685) target = $region80
        $region79: #{tpu_custom_call.1} parent=47 // pred_region
          %v1688 = vld [vmem:[#allocation4] sm:$0xff]
          %v1689 = vld [vmem:[#allocation3] sm:$0xff]
          %v1690 = vrcp.pop %v1689
          %1692 = vset.pattern.permute.xlu0 0
          %1693 = vperm.xlu0 %1692, %v1690
          %v1694 = vpop.permute.xlu0 %1693
          %v1696 = vmul.f32 %v1688, %v1694
          %1697 = vst.msk [vmem:[%s455] sm:$0xff] %vm802, %v1696
        $region80: #{tpu_custom_call.1} parent=47 // pred_fallthru
          _
        %s1698 = sand.u32 %s215, 1
        %s1699 = scalar_lea.sflag [#allocation7], %s1698
        %s1700 = sand.u32 %s215, 1
        %s1701 = smul.addr %s1700, 8
        %s1702 = scalar_lea.vmem [#allocation16], %s1701
        // Predicated region
        $region81: #{tpu_custom_call.1} parent=47 // pred_check
          %p1703 = pneg %p225
        $region82: #{tpu_custom_call.1} parent=47 // pred_check_branch
          %1705 = sbr.rel (%p1703) target = $region84
        $region83: #{tpu_custom_call.1} parent=47 // pred_region
          %s1707 = ssub.s32 128, 128
          %1708 = vsyncadd %s1699, %s1707
          %s1709 = smul.addr %s33, 128
          %s1710 = scalar_lea.hbm %s7, %s1709
          %s1712 = sshll.u32 %s1702, 4
          %s1713 = int_to_ptr.vmem [resolvable:$true] %s1712
          %1715 = dma.vmem_to_hbm [thread:$0]  %s1713, 128, %s1710, %s1699
        $region84: #{tpu_custom_call.1} parent=47 // pred_fallthru
          _
      $region48: #{tpu_custom_call.1} parent=5 // pred_fallthru
        _
      %p1716 = scmp.le.s32.totalorder 2, %s24
      // Predicated region
      $region85: #{tpu_custom_call.1} parent=5 // pred_check
        %p1717 = pneg %p1716
      $region86: #{tpu_custom_call.1} parent=5 // pred_check_branch
        %1719 = sbr.rel (%p1717) target = $region88
      $region87: #{tpu_custom_call.1} parent=5 // pred_region
        %s1720 = ssub.s32 %s24, 2
        // Predicated region
        $region89: #{tpu_custom_call.1} parent=87 // pred_check
          %p1721 = pneg %p231
        $region90: #{tpu_custom_call.1} parent=87 // pred_check_branch
          %1723 = sbr.rel (%p1721) target = $region92
        $region91: #{tpu_custom_call.1} parent=87 // pred_region
          %s1724 = sand.u32 %s216, 1
          %s1725 = scalar_lea.sflag [#allocation7], %s1724
          %s1726 = sand.u32 %s216, 1
          %s1727 = smul.addr %s1726, 8
          %s1728 = scalar_lea.vmem [#allocation16], %s1727
          %1729 = dma.done %s1725, 128
        $region92: #{tpu_custom_call.1} parent=87 // pred_fallthru
          _
      $region88: #{tpu_custom_call.1} parent=5 // pred_fallthru
        _
    $region6: #{tpu_custom_call.1} parent=1 // loop_footer
      %s28 = sadd.s32 1, %s24
    $region7: #{tpu_custom_call.1} parent=1 // loop_footer_branch
      %23 = sbr.rel target = $region3
    $region8: #{tpu_custom_call.1} parent=1 // loop_exit
      _
    %1730 = vsyncpa [#allocation6], 1
    %s1731 = scalar_lea.sflag [#allocation6], 1
    %1732 = vsyncpa %s1731, 1
    %1733 = vsyncpa [#allocation9], 1
    %s1734 = scalar_lea.sflag [#allocation9], 1
    %1735 = vsyncpa %s1734, 1
    %1736 = vsyncpa [#allocation12], 1
    %1737 = vsyncpa [#allocation15], 1
    %1738 = vsyncpa [#allocation7], 1
    %s1739 = scalar_lea.sflag [#allocation7], 1
    %1740 = vsyncpa %s1739, 1

</llo_original>
